<compile_context>
chip_gen: v5e
topology: v5e:2x2
jax: 0.10.0
libtpu: 0.0.40
codegen_flags: <defaults>
</compile_context>

<pallas_src>
import functools
import math

import jax
import jax.numpy as jnp
from jax.experimental import pallas as pl
from jax.experimental.pallas import tpu as pltpu

VMEM = pltpu.MemorySpace.VMEM


# -------------------- embedding LayerNorm --------------------

def _layernorm_kernel(x_ref, g_ref, b_ref, o_ref, *, eps):
    x = x_ref[...]
    mu = jnp.mean(x, axis=-1, keepdims=True)
    var = jnp.mean(jnp.square(x - mu), axis=-1, keepdims=True)
    o_ref[...] = (x - mu) * jax.lax.rsqrt(var + eps) * g_ref[...] + b_ref[...]


def layernorm(x, g, b, eps=1e-12):
    M, H = x.shape
    return pl.pallas_call(
        functools.partial(_layernorm_kernel, eps=eps),
        out_shape=jax.ShapeDtypeStruct((M, H), jnp.float32),
        in_specs=[pl.BlockSpec(memory_space=VMEM)] * 3,
        out_specs=pl.BlockSpec(memory_space=VMEM),
    )(x, g.reshape(1, H), b.reshape(1, H))


# -------------------- fused transformer layer --------------------

def _bert_layer_kernel(x_ref, bias_ref,
                       wqkv_ref, bqkv_ref, wo_ref, bo_ref,
                       ln1_g_ref, ln1_b_ref,
                       w1_ref, b1_ref, w2_ref, b2_ref,
                       ln2_g_ref, ln2_b_ref,
                       o_ref, *, num_heads, eps):
    x = x_ref[0]                              # (L, H) float32 for this batch element
    L, H = x.shape
    d = H // num_heads
    scale = 1.0 / math.sqrt(d)

    def ln(y, g_ref, b_ref):
        mu = jnp.mean(y, axis=-1, keepdims=True)
        var = jnp.mean(jnp.square(y - mu), axis=-1, keepdims=True)
        return (y - mu) * jax.lax.rsqrt(var + eps) * g_ref[...] + b_ref[...]

    # --- fused QKV projection: one (L,H) x (H,3H) bf16 matmul, f32 accumulate ---
    qkv = jnp.dot(x.astype(jnp.bfloat16), wqkv_ref[...],
                  preferred_element_type=jnp.float32) + bqkv_ref[...]   # (L, 3H)
    q = qkv[:, 0:H]
    k = qkv[:, H:2 * H]
    v = qkv[:, 2 * H:3 * H]

    bias = bias_ref[0]                        # (1, L) additive mask, HF-style -1e4

    # --- multi-head attention, heads selected via lane masks (no reshapes) ---
    k_b = k.astype(jnp.bfloat16)
    lane = jax.lax.broadcasted_iota(jnp.int32, (1, H), 1)
    ctx = jnp.zeros((L, H), jnp.float32)
    for hh in range(num_heads):               # static, fully unrolled
        mh = ((lane >= hh * d) & (lane < (hh + 1) * d)).astype(jnp.float32)
        qh = (q * mh).astype(jnp.bfloat16)
        s = jax.lax.dot_general(qh, k_b, (((1,), (1,)), ((), ())),
                                preferred_element_type=jnp.float32) * scale + bias
        p = jax.nn.softmax(s, axis=-1)
        vh = (v * mh).astype(jnp.bfloat16)
        ctx = ctx + jnp.dot(p.astype(jnp.bfloat16), vh,
                            preferred_element_type=jnp.float32)

    attn_out = jnp.dot(ctx.astype(jnp.bfloat16), wo_ref[...],
                       preferred_element_type=jnp.float32) + bo_ref[...]
    x1 = ln(x + attn_out, ln1_g_ref, ln1_b_ref)        # residual folded into LN

    # --- FFN ---
    h1 = jnp.dot(x1.astype(jnp.bfloat16), w1_ref[...],
                 preferred_element_type=jnp.float32) + b1_ref[...]
    # TODO(synk): HF BERT uses exact erf-GELU; tanh approximation used here.
    h1 = jax.nn.gelu(h1, approximate=True)
    ffn = jnp.dot(h1.astype(jnp.bfloat16), w2_ref[...],
                  preferred_element_type=jnp.float32) + b2_ref[...]
    x2 = ln(x1 + ffn, ln2_g_ref, ln2_b_ref)            # residual folded into LN

    o_ref[0] = x2.astype(o_ref.dtype)


def bert_layer(x, mask_bias, lw, num_heads, eps=1e-12):
    B, L, H = x.shape
    I = lw["w1"].shape[1]

    def full(shape):
        nd = len(shape)
        return pl.BlockSpec(shape, lambda b, _nd=nd: (0,) * _nd)

    return pl.pallas_call(
        functools.partial(_bert_layer_kernel, num_heads=num_heads, eps=eps),
        out_shape=jax.ShapeDtypeStruct((B, L, H), jnp.float32),
        grid=(B,),
        in_specs=[
            pl.BlockSpec((1, L, H), lambda b: (b, 0, 0)),   # x
            pl.BlockSpec((1, 1, L), lambda b: (b, 0, 0)),   # additive mask bias
            full((H, 3 * H)), full((1, 3 * H)),             # wqkv, bqkv
            full((H, H)), full((1, H)),                     # wo, bo
            full((1, H)), full((1, H)),                     # ln1 g, b
            full((H, I)), full((1, I)),                     # w1, b1
            full((I, H)), full((1, H)),                     # w2, b2
            full((1, H)), full((1, H)),                     # ln2 g, b
        ],
        out_specs=pl.BlockSpec((1, L, H), lambda b: (b, 0, 0)),
        compiler_params=pltpu.CompilerParams(
            dimension_semantics=("parallel",)),             # v7x: shard batch over 2 TCs
    )(x, mask_bias,
      lw["wqkv"].astype(jnp.bfloat16), lw["bqkv"].reshape(1, 3 * H),
      lw["wo"].astype(jnp.bfloat16), lw["bo"].reshape(1, H),
      lw["ln1_g"].reshape(1, H), lw["ln1_b"].reshape(1, H),
      lw["w1"].astype(jnp.bfloat16), lw["b1"].reshape(1, I),
      lw["w2"].astype(jnp.bfloat16), lw["b2"].reshape(1, H),
      lw["ln2_g"].reshape(1, H), lw["ln2_b"].reshape(1, H))


# -------------------- fused entity + context-attention + final Linear head --------------------

def _entity_context_head_kernel(h_ref, pos1_ref, pos2_ref, len_ref,
                                qw_ref, qb_ref, lw_ref, lb_ref, o_ref):
    h = h_ref[...]                                              # (B, L, H) f32
    B, L, H = h.shape
    pos = jax.lax.broadcasted_iota(jnp.int32, (B, L), 1)

    # one-hot scatter at pos1/pos2 == gather of the entity-start hidden states
    head_oh = (pos == pos1_ref[...]).astype(jnp.float32)        # (B, L)
    tail_oh = (pos == pos2_ref[...]).astype(jnp.float32)
    head_hidden = jnp.sum(head_oh[:, :, None] * h, axis=1)      # (B, H)
    tail_hidden = jnp.sum(tail_oh[:, :, None] * h, axis=1)

    # context attention: scores = Linear(H,1)(hidden); padded positions -> 1e-9
    scores = jnp.sum(h * qw_ref[...].reshape(1, 1, H), axis=-1) + qb_ref[...]   # (B, L)
    # exact semantics of the torch module: padded positions get score 1e-9 (NOT -inf)
    scores = jnp.where(pos >= len_ref[...], jnp.float32(1e-9), scores)
    attn = jax.nn.softmax(scores, axis=-1)
    ctx_hidden = jnp.sum(attn[:, :, None] * h, axis=1)          # (B, H)

    rep = jnp.concatenate([head_hidden, tail_hidden, ctx_hidden], axis=-1)  # (B, 3H)
    out = jnp.dot(rep.astype(jnp.bfloat16), lw_ref[...],
                  preferred_element_type=jnp.float32) + lb_ref[...]
    o_ref[...] = out


def entity_context_head(hidden, pos1, pos2, seq_len, qw, qb, lin_w, lin_b):
    B, L, H = hidden.shape
    H3 = lin_w.shape[1]
    return pl.pallas_call(
        _entity_context_head_kernel,
        out_shape=jax.ShapeDtypeStruct((B, H3), jnp.float32),
        in_specs=[pl.BlockSpec(memory_space=VMEM)] * 8,
        out_specs=pl.BlockSpec(memory_space=VMEM),
    )(hidden,
      pos1.astype(jnp.int32), pos2.astype(jnp.int32), seq_len.astype(jnp.int32),
      qw.reshape(1, H), qb.reshape(1, 1),
      lin_w.astype(jnp.bfloat16), lin_b.reshape(1, H3))


# -------------------- parameter init (deterministic synthetic weights) --------------------

def init_params(key, cfg):
    H, I, V, L, nL = cfg["hidden"], cfg["inter"], cfg["vocab"], cfg["max_len"], cfg["layers"]
    keys = iter(jax.random.split(key, 64))

    def w(shape, scale=0.02):
        return (scale * jax.random.normal(next(keys), shape)).astype(jnp.float32)

    zeros = lambda s: jnp.zeros(s, jnp.float32)
    ones = lambda s: jnp.ones(s, jnp.float32)

    params = {
        "word_emb": w((V, H)),
        "pos_emb": w((L, H)),
        "type_emb": w((2, H)),
        "emb_ln_g": ones((H,)), "emb_ln_b": zeros((H,)),
        "layers": [],
        "ctx_q_w": w((H,)), "ctx_q_b": zeros((1,)),        # nn.Linear(H, 1)
        "lin_w": w((3 * H, 3 * H)), "lin_b": zeros((3 * H,)),   # nn.Linear(3H, 3H)
    }
    for _ in range(nL):
        params["layers"].append({
            "wqkv": w((H, 3 * H)), "bqkv": zeros((3 * H,)),     # fused Q|K|V projection
            "wo": w((H, H)), "bo": zeros((H,)),
            "ln1_g": ones((H,)), "ln1_b": zeros((H,)),
            "w1": w((H, I)), "b1": zeros((I,)),
            "w2": w((I, H)), "b2": zeros((H,)),
            "ln2_g": ones((H,)), "ln2_b": zeros((H,)),
        })
    return params


# -------------------- forward --------------------

def forward(params, seqs, pos1, pos2, att_mask, cfg):
    B, L = seqs.shape
    H, nH = cfg["hidden"], cfg["heads"]

    # BERT embeddings (table gathers are XLA glue; LayerNorm in Pallas)
    emb = (params["word_emb"][seqs]
           + params["pos_emb"][jnp.arange(L)][None, :, :]
           + params["type_emb"][0][None, None, :])       # token_type_ids default to 0
    x = layernorm(emb.reshape(B * L, H), params["emb_ln_g"], params["emb_ln_b"])
    x = x.reshape(B, L, H)

    # HF-style additive attention mask, computed ONCE for all layers
    mask_bias = ((1.0 - att_mask.astype(jnp.float32)) * -10000.0).reshape(B, 1, L)

    # one fused Pallas kernel per transformer layer
    for lw in params["layers"]:
        x = bert_layer(x, mask_bias, lw, num_heads=nH)

    # entity gathers + context attention + Linear(3H, 3H), fused in one kernel
    seq_len = jnp.sum(att_mask, axis=-1).astype(jnp.int32).reshape(B, 1)
    return entity_context_head(x, pos1, pos2, seq_len,
                               params["ctx_q_w"], params["ctx_q_b"],
                               params["lin_w"], params["lin_b"])


# -------------------- main --------------------

if __name__ == "__main__":
    cfg = dict(vocab=120, hidden=32, heads=4, inter=64, layers=2, max_len=16)
    B, L = 2, cfg["max_len"]

    params = init_params(jax.random.PRNGKey(0), cfg)

    kseq, kp1, kp2 = jax.random.split(jax.random.PRNGKey(0), 3)
    seqs = jax.random.randint(kseq, (B, L), 0, cfg["vocab"], dtype=jnp.int32)
    seq_lens = jnp.array([12, 16], jnp.int32)
    att_mask = (jnp.arange(L)[None, :] < seq_lens[:, None]).astype(jnp.int32)
    pos1 = jax.random.randint(kp1, (B, 1), 0, 12, dtype=jnp.int32)
    pos2 = jax.random.randint(kp2, (B, 1), 0, 12, dtype=jnp.int32)

    fwd = jax.jit(lambda p, s, p1, p2, m: forward(p, s, p1, p2, m, cfg))
    out = fwd(params, seqs, pos1, pos2, att_mask)
    jax.block_until_ready(out)

    assert out.shape == (B, 3 * cfg["hidden"]), out.shape
    assert out.dtype == jnp.float32
    print("KERNEL_OK")
</pallas_src>

<mosaic_0001>
module attributes {stable_mosaic.version = 11 : i64} {
  func.func @_entity_context_head_kernel(%arg0: memref<2x16x32xf32, #tpu.memory_space<vmem>>, %arg1: memref<2x1xi32, #tpu.memory_space<vmem>>, %arg2: memref<2x1xi32, #tpu.memory_space<vmem>>, %arg3: memref<2x1xi32, #tpu.memory_space<vmem>>, %arg4: memref<1x32xf32, #tpu.memory_space<vmem>>, %arg5: memref<1x1xf32, #tpu.memory_space<vmem>>, %arg6: memref<96x96xbf16, #tpu.memory_space<vmem>>, %arg7: memref<1x96xf32, #tpu.memory_space<vmem>>, %arg8: memref<2x96xf32, #tpu.memory_space<vmem>>) attributes {dimension_semantics = [], scalar_prefetch = 0 : i64, scratch_operands = 0 : i64, tpu.core_type = #tpu.core_type<tc>} {
    %c0 = arith.constant 0 : index
    %c0_0 = arith.constant 0 : index
    %c0_1 = arith.constant 0 : index
    %0 = vector.load %arg0[%c0, %c0_0, %c0_1] : memref<2x16x32xf32, #tpu.memory_space<vmem>>, vector<2x16x32xf32>
    %1 = tpu.iota {dimensions = array<i32: 1>} : vector<2x16xi32>
    %c0_2 = arith.constant 0 : index
    %c0_3 = arith.constant 0 : index
    %2 = vector.load %arg1[%c0_2, %c0_3] : memref<2x1xi32, #tpu.memory_space<vmem>>, vector<2x1xi32>
    %3 = vector.broadcast %2 : vector<2x1xi32> to vector<2x16xi32>
    %4 = arith.cmpi eq, %1, %3 : vector<2x16xi32>
    %5 = arith.extui %4 : vector<2x16xi1> to vector<2x16xi32>
    %6 = arith.sitofp %5 : vector<2x16xi32> to vector<2x16xf32>
    %c0_4 = arith.constant 0 : index
    %c0_5 = arith.constant 0 : index
    %7 = vector.load %arg2[%c0_4, %c0_5] : memref<2x1xi32, #tpu.memory_space<vmem>>, vector<2x1xi32>
    %8 = vector.broadcast %7 : vector<2x1xi32> to vector<2x16xi32>
    %9 = arith.cmpi eq, %1, %8 : vector<2x16xi32>
    %10 = arith.extui %9 : vector<2x16xi1> to vector<2x16xi32>
    %11 = arith.sitofp %10 : vector<2x16xi32> to vector<2x16xf32>
    %12 = vector.shape_cast %6 : vector<2x16xf32> to vector<2x16x1xf32>
    %13 = vector.broadcast %12 : vector<2x16x1xf32> to vector<2x16x32xf32>
    %14 = arith.mulf %13, %0 : vector<2x16x32xf32>
    %cst = arith.constant dense<0.000000e+00> : vector<2x32xf32>
    %15 = vector.multi_reduction <add>, %14, %cst [1] : vector<2x16x32xf32> to vector<2x32xf32>
    %16 = vector.shape_cast %11 : vector<2x16xf32> to vector<2x16x1xf32>
    %17 = vector.broadcast %16 : vector<2x16x1xf32> to vector<2x16x32xf32>
    %18 = arith.mulf %17, %0 : vector<2x16x32xf32>
    %cst_6 = arith.constant dense<0.000000e+00> : vector<2x32xf32>
    %19 = vector.multi_reduction <add>, %18, %cst_6 [1] : vector<2x16x32xf32> to vector<2x32xf32>
    %c0_7 = arith.constant 0 : index
    %c0_8 = arith.constant 0 : index
    %20 = vector.load %arg4[%c0_7, %c0_8] : memref<1x32xf32, #tpu.memory_space<vmem>>, vector<1x32xf32>
    %21 = vector.shape_cast %20 : vector<1x32xf32> to vector<1x1x32xf32>
    %22 = vector.broadcast %21 : vector<1x1x32xf32> to vector<2x16x32xf32>
    %23 = arith.mulf %0, %22 : vector<2x16x32xf32>
    %cst_9 = arith.constant dense<0.000000e+00> : vector<2x16xf32>
    %24 = vector.multi_reduction <add>, %23, %cst_9 [2] : vector<2x16x32xf32> to vector<2x16xf32>
    %c0_10 = arith.constant 0 : index
    %c0_11 = arith.constant 0 : index
    %25 = vector.load %arg5[%c0_10, %c0_11] : memref<1x1xf32, #tpu.memory_space<vmem>>, vector<1x1xf32>
    %26 = vector.broadcast %25 : vector<1x1xf32> to vector<2x16xf32>
    %27 = arith.addf %24, %26 : vector<2x16xf32>
    %c0_12 = arith.constant 0 : index
    %c0_13 = arith.constant 0 : index
    %28 = vector.load %arg3[%c0_12, %c0_13] : memref<2x1xi32, #tpu.memory_space<vmem>>, vector<2x1xi32>
    %29 = vector.broadcast %28 : vector<2x1xi32> to vector<2x16xi32>
    %30 = arith.cmpi sge, %1, %29 : vector<2x16xi32>
    %cst_14 = arith.constant 9.99999971E-10 : f32
    %31 = vector.broadcast %cst_14 : f32 to vector<2x16xf32>
    %32 = arith.select %30, %31, %27 : vector<2x16xi1>, vector<2x16xf32>
    %cst_15 = arith.constant dense<0xFF800000> : vector<2xf32>
    %33 = vector.multi_reduction <maximumf>, %32, %cst_15 [1] : vector<2x16xf32> to vector<2xf32>
    %cst_16 = arith.constant 0xFF800000 : f32
    %34 = vector.broadcast %cst_16 : f32 to vector<2xf32>
    %35 = arith.maximumf %34, %33 : vector<2xf32>
    %36 = vector.shape_cast %35 : vector<2xf32> to vector<2x1xf32>
    %37 = vector.broadcast %36 : vector<2x1xf32> to vector<2x16xf32>
    %38 = arith.subf %32, %37 : vector<2x16xf32>
    %39 = math.exp %38 : vector<2x16xf32>
    %cst_17 = arith.constant dense<0.000000e+00> : vector<2xf32>
    %40 = vector.multi_reduction <add>, %39, %cst_17 [1] : vector<2x16xf32> to vector<2xf32>
    %41 = vector.shape_cast %40 : vector<2xf32> to vector<2x1xf32>
    %42 = vector.broadcast %41 : vector<2x1xf32> to vector<2x16xf32>
    %43 = arith.divf %39, %42 : vector<2x16xf32>
    %44 = vector.shape_cast %43 : vector<2x16xf32> to vector<2x16x1xf32>
    %45 = vector.broadcast %44 : vector<2x16x1xf32> to vector<2x16x32xf32>
    %46 = arith.mulf %45, %0 : vector<2x16x32xf32>
    %cst_18 = arith.constant dense<0.000000e+00> : vector<2x32xf32>
    %47 = vector.multi_reduction <add>, %46, %cst_18 [1] : vector<2x16x32xf32> to vector<2x32xf32>
    %48 = tpu.concatenate %15, %19, %47 in 1 : vector<2x32xf32>, vector<2x32xf32>, vector<2x32xf32> -> vector<2x96xf32>
    %49 = arith.truncf %48 : vector<2x96xf32> to vector<2x96xbf16>
    %c0_19 = arith.constant 0 : index
    %c0_20 = arith.constant 0 : index
    %50 = vector.load %arg6[%c0_19, %c0_20] : memref<96x96xbf16, #tpu.memory_space<vmem>>, vector<96x96xbf16>
    %cst_21 = arith.constant dense<0.000000e+00> : vector<2x96xf32>
    %51 = tpu.matmul %49, %50, %cst_21 {dimension_numbers = #tpu.dot_dimension_numbers<[1], [0], [0], [1], [0, 0, 1, 1], [], []>} : vector<2x96xbf16>, vector<96x96xbf16>, vector<2x96xf32> -> vector<2x96xf32>
    %c0_22 = arith.constant 0 : index
    %c0_23 = arith.constant 0 : index
    %52 = vector.load %arg7[%c0_22, %c0_23] : memref<1x96xf32, #tpu.memory_space<vmem>>, vector<1x96xf32>
    %53 = vector.broadcast %52 : vector<1x96xf32> to vector<2x96xf32>
    %54 = arith.addf %51, %53 : vector<2x96xf32>
    %c0_24 = arith.constant 0 : index
    %c0_25 = arith.constant 0 : index
    %55 = vector.load %arg8[%c0_24, %c0_25] : memref<2x96xf32, #tpu.memory_space<vmem>>, vector<2x96xf32>
    tpu.vector_store %arg8[%c0_24, %c0_25], %54 {strides = array<i32>} : memref<2x96xf32, #tpu.memory_space<vmem>>, vector<2x96xf32>,
    return
  }
}

module attributes {stable_mosaic.version = 11 : i64} {
  func.func @_layernorm_kernel(%arg0: memref<32x32xf32, #tpu.memory_space<vmem>>, %arg1: memref<1x32xf32, #tpu.memory_space<vmem>>, %arg2: memref<1x32xf32, #tpu.memory_space<vmem>>, %arg3: memref<32x32xf32, #tpu.memory_space<vmem>>) attributes {dimension_semantics = [], scalar_prefetch = 0 : i64, scratch_operands = 0 : i64, tpu.core_type = #tpu.core_type<tc>} {
    %c0 = arith.constant 0 : index
    %c0_0 = arith.constant 0 : index
    %0 = vector.load %arg0[%c0, %c0_0] : memref<32x32xf32, #tpu.memory_space<vmem>>, vector<32x32xf32>
    %cst = arith.constant dense<0.000000e+00> : vector<32xf32>
    %1 = vector.multi_reduction <add>, %0, %cst [1] : vector<32x32xf32> to vector<32xf32>
    %2 = vector.shape_cast %1 : vector<32xf32> to vector<32x1xf32>
    %cst_1 = arith.constant 3.200000e+01 : f32
    %3 = vector.broadcast %cst_1 : f32 to vector<32x1xf32>
    %4 = arith.divf %2, %3 : vector<32x1xf32>
    %5 = vector.broadcast %4 : vector<32x1xf32> to vector<32x32xf32>
    %6 = arith.subf %0, %5 : vector<32x32xf32>
    %7 = arith.mulf %6, %6 : vector<32x32xf32>
    %cst_2 = arith.constant dense<0.000000e+00> : vector<32xf32>
    %8 = vector.multi_reduction <add>, %7, %cst_2 [1] : vector<32x32xf32> to vector<32xf32>
    %9 = vector.shape_cast %8 : vector<32xf32> to vector<32x1xf32>
    %cst_3 = arith.constant 3.200000e+01 : f32
    %10 = vector.broadcast %cst_3 : f32 to vector<32x1xf32>
    %11 = arith.divf %9, %10 : vector<32x1xf32>
    %12 = vector.broadcast %4 : vector<32x1xf32> to vector<32x32xf32>
    %13 = arith.subf %0, %12 : vector<32x32xf32>
    %cst_4 = arith.constant 9.99999996E-13 : f32
    %14 = vector.broadcast %cst_4 : f32 to vector<32x1xf32>
    %15 = arith.addf %11, %14 : vector<32x1xf32>
    %16 = math.rsqrt %15 : vector<32x1xf32>
    %17 = vector.broadcast %16 : vector<32x1xf32> to vector<32x32xf32>
    %18 = arith.mulf %13, %17 : vector<32x32xf32>
    %c0_5 = arith.constant 0 : index
    %c0_6 = arith.constant 0 : index
    %19 = vector.load %arg1[%c0_5, %c0_6] : memref<1x32xf32, #tpu.memory_space<vmem>>, vector<1x32xf32>
    %20 = vector.broadcast %19 : vector<1x32xf32> to vector<32x32xf32>
    %21 = arith.mulf %18, %20 : vector<32x32xf32>
    %c0_7 = arith.constant 0 : index
    %c0_8 = arith.constant 0 : index
    %22 = vector.load %arg2[%c0_7, %c0_8] : memref<1x32xf32, #tpu.memory_space<vmem>>, vector<1x32xf32>
    %23 = vector.broadcast %22 : vector<1x32xf32> to vector<32x32xf32>
    %24 = arith.addf %21, %23 : vector<32x32xf32>
    %c0_9 = arith.constant 0 : index
    %c0_10 = arith.constant 0 : index
    %25 = vector.load %arg3[%c0_9, %c0_10] : memref<32x32xf32, #tpu.memory_space<vmem>>, vector<32x32xf32>
    tpu.vector_store %arg3[%c0_9, %c0_10], %24 {strides = array<i32>} : memref<32x32xf32, #tpu.memory_space<vmem>>, vector<32x32xf32>,
    return
  }
}

module attributes {stable_mosaic.version = 11 : i64} {
  func.func @_bert_layer_kernel(%arg0: i32, %arg1: memref<1x16x32xf32, #tpu.memory_space<vmem>>, %arg2: memref<1x1x16xf32, #tpu.memory_space<vmem>>, %arg3: memref<32x96xbf16, #tpu.memory_space<vmem>>, %arg4: memref<1x96xf32, #tpu.memory_space<vmem>>, %arg5: memref<32x32xbf16, #tpu.memory_space<vmem>>, %arg6: memref<1x32xf32, #tpu.memory_space<vmem>>, %arg7: memref<1x32xf32, #tpu.memory_space<vmem>>, %arg8: memref<1x32xf32, #tpu.memory_space<vmem>>, %arg9: memref<32x64xbf16, #tpu.memory_space<vmem>>, %arg10: memref<1x64xf32, #tpu.memory_space<vmem>>, %arg11: memref<64x32xbf16, #tpu.memory_space<vmem>>, %arg12: memref<1x32xf32, #tpu.memory_space<vmem>>, %arg13: memref<1x32xf32, #tpu.memory_space<vmem>>, %arg14: memref<1x32xf32, #tpu.memory_space<vmem>>, %arg15: memref<1x16x32xf32, #tpu.memory_space<vmem>>) attributes {dimension_semantics = [#tpu.dimension_semantics<parallel>], iteration_bounds = array<i64: 2>, scalar_prefetch = 0 : i64, scratch_operands = 0 : i64, tpu.core_type = #tpu.core_type<tc>, window_params = [{transform_indices = @transform_0, window_bounds = array<i64: 1, 16, 32>}, {transform_indices = @transform_1, window_bounds = array<i64: 1, 1, 16>}, {pipeline_mode = #tpu.pipeline_mode<synchronous>, transform_indices = @transform_2, window_bounds = array<i64: 32, 96>}, {pipeline_mode = #tpu.pipeline_mode<synchronous>, transform_indices = @transform_3, window_bounds = array<i64: 1, 96>}, {pipeline_mode = #tpu.pipeline_mode<synchronous>, transform_indices = @transform_4, window_bounds = array<i64: 32, 32>}, {pipeline_mode = #tpu.pipeline_mode<synchronous>, transform_indices = @transform_5, window_bounds = array<i64: 1, 32>}, {pipeline_mode = #tpu.pipeline_mode<synchronous>, transform_indices = @transform_6, window_bounds = array<i64: 1, 32>}, {pipeline_mode = #tpu.pipeline_mode<synchronous>, transform_indices = @transform_7, window_bounds = array<i64: 1, 32>}, {pipeline_mode = #tpu.pipeline_mode<synchronous>, transform_indices = @transform_8, window_bounds = array<i64: 32, 64>}, {pipeline_mode = #tpu.pipeline_mode<synchronous>, transform_indices = @transform_9, window_bounds = array<i64: 1, 64>}, {pipeline_mode = #tpu.pipeline_mode<synchronous>, transform_indices = @transform_10, window_bounds = array<i64: 64, 32>}, {pipeline_mode = #tpu.pipeline_mode<synchronous>, transform_indices = @transform_11, window_bounds = array<i64: 1, 32>}, {pipeline_mode = #tpu.pipeline_mode<synchronous>, transform_indices = @transform_12, window_bounds = array<i64: 1, 32>}, {pipeline_mode = #tpu.pipeline_mode<synchronous>, transform_indices = @transform_13, window_bounds = array<i64: 1, 32>}, {transform_indices = @transform_14, window_bounds = array<i64: 1, 16, 32>}]} {
    %c0 = arith.constant 0 : index
    %c0_0 = arith.constant 0 : index
    %c0_1 = arith.constant 0 : index
    %0 = vector.load %arg1[%c0, %c0_0, %c0_1] : memref<1x16x32xf32, #tpu.memory_space<vmem>>, vector<1x16x32xf32>
    %1 = vector.shape_cast %0 : vector<1x16x32xf32> to vector<16x32xf32>
    %2 = arith.truncf %1 : vector<16x32xf32> to vector<16x32xbf16>
    %c0_2 = arith.constant 0 : index
    %c0_3 = arith.constant 0 : index
    %3 = vector.load %arg3[%c0_2, %c0_3] : memref<32x96xbf16, #tpu.memory_space<vmem>>, vector<32x96xbf16>
    %cst = arith.constant dense<0.000000e+00> : vector<16x96xf32>
    %4 = tpu.matmul %2, %3, %cst {dimension_numbers = #tpu.dot_dimension_numbers<[1], [0], [0], [1], [0, 0, 1, 1], [], []>} : vector<16x32xbf16>, vector<32x96xbf16>, vector<16x96xf32> -> vector<16x96xf32>
    %c0_4 = arith.constant 0 : index
    %c0_5 = arith.constant 0 : index
    %5 = vector.load %arg4[%c0_4, %c0_5] : memref<1x96xf32, #tpu.memory_space<vmem>>, vector<1x96xf32>
    %6 = vector.broadcast %5 : vector<1x96xf32> to vector<16x96xf32>
    %7 = arith.addf %4, %6 : vector<16x96xf32>
    %8 = vector.extract_strided_slice %7 {offsets = [0, 0], sizes = [16, 32], strides = [1, 1]} : vector<16x96xf32> to vector<16x32xf32>
    %9 = vector.extract_strided_slice %7 {offsets = [0, 32], sizes = [16, 32], strides = [1, 1]} : vector<16x96xf32> to vector<16x32xf32>
    %10 = vector.extract_strided_slice %7 {offsets = [0, 64], sizes = [16, 32], strides = [1, 1]} : vector<16x96xf32> to vector<16x32xf32>
    %c0_6 = arith.constant 0 : index
    %c0_7 = arith.constant 0 : index
    %c0_8 = arith.constant 0 : index
    %11 = vector.load %arg2[%c0_6, %c0_7, %c0_8] : memref<1x1x16xf32, #tpu.memory_space<vmem>>, vector<1x1x16xf32>
    %12 = vector.shape_cast %11 : vector<1x1x16xf32> to vector<1x16xf32>
    %13 = arith.truncf %9 : vector<16x32xf32> to vector<16x32xbf16>
    %14 = tpu.iota {dimensions = array<i32: 1>} : vector<1x32xi32>
    %cst_9 = arith.constant 0.000000e+00 : f32
    %15 = vector.broadcast %cst_9 : f32 to vector<16x32xf32>
    %c0_i32 = arith.constant 0 : i32
    %16 = vector.broadcast %c0_i32 : i32 to vector<1x32xi32>
    %17 = arith.cmpi sge, %14, %16 : vector<1x32xi32>
    %c8_i32 = arith.constant 8 : i32
    %18 = vector.broadcast %c8_i32 : i32 to vector<1x32xi32>
    %19 = arith.cmpi slt, %14, %18 : vector<1x32xi32>
    %20 = arith.andi %17, %19 : vector<1x32xi1>
    %21 = arith.extui %20 : vector<1x32xi1> to vector<1x32xi32>
    %22 = arith.sitofp %21 : vector<1x32xi32> to vector<1x32xf32>
    %23 = vector.broadcast %22 : vector<1x32xf32> to vector<16x32xf32>
    %24 = arith.mulf %8, %23 : vector<16x32xf32>
    %25 = arith.truncf %24 : vector<16x32xf32> to vector<16x32xbf16>
    %cst_10 = arith.constant dense<0.000000e+00> : vector<16x16xf32>
    %26 = tpu.matmul %25, %13, %cst_10 {dimension_numbers = #tpu.dot_dimension_numbers<[1], [1], [0], [0], [0, 0, 1, 0], [], []>} : vector<16x32xbf16>, vector<16x32xbf16>, vector<16x16xf32> -> vector<16x16xf32>
    %cst_11 = arith.constant 0.353553385 : f32
    %27 = vector.broadcast %cst_11 : f32 to vector<16x16xf32>
    %28 = arith.mulf %26, %27 : vector<16x16xf32>
    %29 = vector.broadcast %12 : vector<1x16xf32> to vector<16x16xf32>
    %30 = arith.addf %28, %29 : vector<16x16xf32>
    %cst_12 = arith.constant dense<0xFF800000> : vector<16xf32>
    %31 = vector.multi_reduction <maximumf>, %30, %cst_12 [1] : vector<16x16xf32> to vector<16xf32>
    %cst_13 = arith.constant 0xFF800000 : f32
    %32 = vector.broadcast %cst_13 : f32 to vector<16xf32>
    %33 = arith.maximumf %32, %31 : vector<16xf32>
    %34 = vector.shape_cast %33 : vector<16xf32> to vector<16x1xf32>
    %35 = vector.broadcast %34 : vector<16x1xf32> to vector<16x16xf32>
    %36 = arith.subf %30, %35 : vector<16x16xf32>
    %37 = math.exp %36 : vector<16x16xf32>
    %cst_14 = arith.constant dense<0.000000e+00> : vector<16xf32>
    %38 = vector.multi_reduction <add>, %37, %cst_14 [1] : vector<16x16xf32> to vector<16xf32>
    %39 = vector.shape_cast %38 : vector<16xf32> to vector<16x1xf32>
    %40 = vector.broadcast %39 : vector<16x1xf32> to vector<16x16xf32>
    %41 = arith.divf %37, %40 : vector<16x16xf32>
    %42 = vector.broadcast %22 : vector<1x32xf32> to vector<16x32xf32>
    %43 = arith.mulf %10, %42 : vector<16x32xf32>
    %44 = arith.truncf %43 : vector<16x32xf32> to vector<16x32xbf16>
    %45 = arith.truncf %41 : vector<16x16xf32> to vector<16x16xbf16>
    %cst_15 = arith.constant dense<0.000000e+00> : vector<16x32xf32>
    %46 = tpu.matmul %45, %44, %cst_15 {dimension_numbers = #tpu.dot_dimension_numbers<[1], [0], [0], [1], [0, 0, 1, 1], [], []>} : vector<16x16xbf16>, vector<16x32xbf16>, vector<16x32xf32> -> vector<16x32xf32>
    %47 = arith.addf %15, %46 : vector<16x32xf32>
    %c8_i32_16 = arith.constant 8 : i32
    %48 = vector.broadcast %c8_i32_16 : i32 to vector<1x32xi32>
    %49 = arith.cmpi sge, %14, %48 : vector<1x32xi32>
    %c16_i32 = arith.constant 16 : i32
    %50 = vector.broadcast %c16_i32 : i32 to vector<1x32xi32>
    %51 = arith.cmpi slt, %14, %50 : vector<1x32xi32>
    %52 = arith.andi %49, %51 : vector<1x32xi1>
    %53 = arith.extui %52 : vector<1x32xi1> to vector<1x32xi32>
    %54 = arith.sitofp %53 : vector<1x32xi32> to vector<1x32xf32>
    %55 = vector.broadcast %54 : vector<1x32xf32> to vector<16x32xf32>
    %56 = arith.mulf %8, %55 : vector<16x32xf32>
    %57 = arith.truncf %56 : vector<16x32xf32> to vector<16x32xbf16>
    %cst_17 = arith.constant dense<0.000000e+00> : vector<16x16xf32>
    %58 = tpu.matmul %57, %13, %cst_17 {dimension_numbers = #tpu.dot_dimension_numbers<[1], [1], [0], [0], [0, 0, 1, 0], [], []>} : vector<16x32xbf16>, vector<16x32xbf16>, vector<16x16xf32> -> vector<16x16xf32>
    %cst_18 = arith.constant 0.353553385 : f32
    %59 = vector.broadcast %cst_18 : f32 to vector<16x16xf32>
    %60 = arith.mulf %58, %59 : vector<16x16xf32>
    %61 = vector.broadcast %12 : vector<1x16xf32> to vector<16x16xf32>
    %62 = arith.addf %60, %61 : vector<16x16xf32>
    %cst_19 = arith.constant dense<0xFF800000> : vector<16xf32>
    %63 = vector.multi_reduction <maximumf>, %62, %cst_19 [1] : vector<16x16xf32> to vector<16xf32>
    %cst_20 = arith.constant 0xFF800000 : f32
    %64 = vector.broadcast %cst_20 : f32 to vector<16xf32>
    %65 = arith.maximumf %64, %63 : vector<16xf32>
    %66 = vector.shape_cast %65 : vector<16xf32> to vector<16x1xf32>
    %67 = vector.broadcast %66 : vector<16x1xf32> to vector<16x16xf32>
    %68 = arith.subf %62, %67 : vector<16x16xf32>
    %69 = math.exp %68 : vector<16x16xf32>
    %cst_21 = arith.constant dense<0.000000e+00> : vector<16xf32>
    %70 = vector.multi_reduction <add>, %69, %cst_21 [1] : vector<16x16xf32> to vector<16xf32>
    %71 = vector.shape_cast %70 : vector<16xf32> to vector<16x1xf32>
    %72 = vector.broadcast %71 : vector<16x1xf32> to vector<16x16xf32>
    %73 = arith.divf %69, %72 : vector<16x16xf32>
    %74 = vector.broadcast %54 : vector<1x32xf32> to vector<16x32xf32>
    %75 = arith.mulf %10, %74 : vector<16x32xf32>
    %76 = arith.truncf %75 : vector<16x32xf32> to vector<16x32xbf16>
    %77 = arith.truncf %73 : vector<16x16xf32> to vector<16x16xbf16>
    %cst_22 = arith.constant dense<0.000000e+00> : vector<16x32xf32>
    %78 = tpu.matmul %77, %76, %cst_22 {dimension_numbers = #tpu.dot_dimension_numbers<[1], [0], [0], [1], [0, 0, 1, 1], [], []>} : vector<16x16xbf16>, vector<16x32xbf16>, vector<16x32xf32> -> vector<16x32xf32>
    %79 = arith.addf %47, %78 : vector<16x32xf32>
    %c16_i32_23 = arith.constant 16 : i32
    %80 = vector.broadcast %c16_i32_23 : i32 to vector<1x32xi32>
    %81 = arith.cmpi sge, %14, %80 : vector<1x32xi32>
    %c24_i32 = arith.constant 24 : i32
    %82 = vector.broadcast %c24_i32 : i32 to vector<1x32xi32>
    %83 = arith.cmpi slt, %14, %82 : vector<1x32xi32>
    %84 = arith.andi %81, %83 : vector<1x32xi1>
    %85 = arith.extui %84 : vector<1x32xi1> to vector<1x32xi32>
    %86 = arith.sitofp %85 : vector<1x32xi32> to vector<1x32xf32>
    %87 = vector.broadcast %86 : vector<1x32xf32> to vector<16x32xf32>
    %88 = arith.mulf %8, %87 : vector<16x32xf32>
    %89 = arith.truncf %88 : vector<16x32xf32> to vector<16x32xbf16>
    %cst_24 = arith.constant dense<0.000000e+00> : vector<16x16xf32>
    %90 = tpu.matmul %89, %13, %cst_24 {dimension_numbers = #tpu.dot_dimension_numbers<[1], [1], [0], [0], [0, 0, 1, 0], [], []>} : vector<16x32xbf16>, vector<16x32xbf16>, vector<16x16xf32> -> vector<16x16xf32>
    %cst_25 = arith.constant 0.353553385 : f32
    %91 = vector.broadcast %cst_25 : f32 to vector<16x16xf32>
    %92 = arith.mulf %90, %91 : vector<16x16xf32>
    %93 = vector.broadcast %12 : vector<1x16xf32> to vector<16x16xf32>
    %94 = arith.addf %92, %93 : vector<16x16xf32>
    %cst_26 = arith.constant dense<0xFF800000> : vector<16xf32>
    %95 = vector.multi_reduction <maximumf>, %94, %cst_26 [1] : vector<16x16xf32> to vector<16xf32>
    %cst_27 = arith.constant 0xFF800000 : f32
    %96 = vector.broadcast %cst_27 : f32 to vector<16xf32>
    %97 = arith.maximumf %96, %95 : vector<16xf32>
    %98 = vector.shape_cast %97 : vector<16xf32> to vector<16x1xf32>
    %99 = vector.broadcast %98 : vector<16x1xf32> to vector<16x16xf32>
    %100 = arith.subf %94, %99 : vector<16x16xf32>
    %101 = math.exp %100 : vector<16x16xf32>
    %cst_28 = arith.constant dense<0.000000e+00> : vector<16xf32>
    %102 = vector.multi_reduction <add>, %101, %cst_28 [1] : vector<16x16xf32> to vector<16xf32>
    %103 = vector.shape_cast %102 : vector<16xf32> to vector<16x1xf32>
    %104 = vector.broadcast %103 : vector<16x1xf32> to vector<16x16xf32>
    %105 = arith.divf %101, %104 : vector<16x16xf32>
    %106 = vector.broadcast %86 : vector<1x32xf32> to vector<16x32xf32>
    %107 = arith.mulf %10, %106 : vector<16x32xf32>
    %108 = arith.truncf %107 : vector<16x32xf32> to vector<16x32xbf16>
    %109 = arith.truncf %105 : vector<16x16xf32> to vector<16x16xbf16>
    %cst_29 = arith.constant dense<0.000000e+00> : vector<16x32xf32>
    %110 = tpu.matmul %109, %108, %cst_29 {dimension_numbers = #tpu.dot_dimension_numbers<[1], [0], [0], [1], [0, 0, 1, 1], [], []>} : vector<16x16xbf16>, vector<16x32xbf16>, vector<16x32xf32> -> vector<16x32xf32>
    %111 = arith.addf %79, %110 : vector<16x32xf32>
    %c24_i32_30 = arith.constant 24 : i32
    %112 = vector.broadcast %c24_i32_30 : i32 to vector<1x32xi32>
    %113 = arith.cmpi sge, %14, %112 : vector<1x32xi32>
    %c32_i32 = arith.constant 32 : i32
    %114 = vector.broadcast %c32_i32 : i32 to vector<1x32xi32>
    %115 = arith.cmpi slt, %14, %114 : vector<1x32xi32>
    %116 = arith.andi %113, %115 : vector<1x32xi1>
    %117 = arith.extui %116 : vector<1x32xi1> to vector<1x32xi32>
    %118 = arith.sitofp %117 : vector<1x32xi32> to vector<1x32xf32>
    %119 = vector.broadcast %118 : vector<1x32xf32> to vector<16x32xf32>
    %120 = arith.mulf %8, %119 : vector<16x32xf32>
    %121 = arith.truncf %120 : vector<16x32xf32> to vector<16x32xbf16>
    %cst_31 = arith.constant dense<0.000000e+00> : vector<16x16xf32>
    %122 = tpu.matmul %121, %13, %cst_31 {dimension_numbers = #tpu.dot_dimension_numbers<[1], [1], [0], [0], [0, 0, 1, 0], [], []>} : vector<16x32xbf16>, vector<16x32xbf16>, vector<16x16xf32> -> vector<16x16xf32>
    %cst_32 = arith.constant 0.353553385 : f32
    %123 = vector.broadcast %cst_32 : f32 to vector<16x16xf32>
    %124 = arith.mulf %122, %123 : vector<16x16xf32>
    %125 = vector.broadcast %12 : vector<1x16xf32> to vector<16x16xf32>
    %126 = arith.addf %124, %125 : vector<16x16xf32>
    %cst_33 = arith.constant dense<0xFF800000> : vector<16xf32>
    %127 = vector.multi_reduction <maximumf>, %126, %cst_33 [1] : vector<16x16xf32> to vector<16xf32>
    %cst_34 = arith.constant 0xFF800000 : f32
    %128 = vector.broadcast %cst_34 : f32 to vector<16xf32>
    %129 = arith.maximumf %128, %127 : vector<16xf32>
    %130 = vector.shape_cast %129 : vector<16xf32> to vector<16x1xf32>
    %131 = vector.broadcast %130 : vector<16x1xf32> to vector<16x16xf32>
    %132 = arith.subf %126, %131 : vector<16x16xf32>
    %133 = math.exp %132 : vector<16x16xf32>
    %cst_35 = arith.constant dense<0.000000e+00> : vector<16xf32>
    %134 = vector.multi_reduction <add>, %133, %cst_35 [1] : vector<16x16xf32> to vector<16xf32>
    %135 = vector.shape_cast %134 : vector<16xf32> to vector<16x1xf32>
    %136 = vector.broadcast %135 : vector<16x1xf32> to vector<16x16xf32>
    %137 = arith.divf %133, %136 : vector<16x16xf32>
    %138 = vector.broadcast %118 : vector<1x32xf32> to vector<16x32xf32>
    %139 = arith.mulf %10, %138 : vector<16x32xf32>
    %140 = arith.truncf %139 : vector<16x32xf32> to vector<16x32xbf16>
    %141 = arith.truncf %137 : vector<16x16xf32> to vector<16x16xbf16>
    %cst_36 = arith.constant dense<0.000000e+00> : vector<16x32xf32>
    %142 = tpu.matmul %141, %140, %cst_36 {dimension_numbers = #tpu.dot_dimension_numbers<[1], [0], [0], [1], [0, 0, 1, 1], [], []>} : vector<16x16xbf16>, vector<16x32xbf16>, vector<16x32xf32> -> vector<16x32xf32>
    %143 = arith.addf %111, %142 : vector<16x32xf32>
    %144 = arith.truncf %143 : vector<16x32xf32> to vector<16x32xbf16>
    %c0_37 = arith.constant 0 : index
    %c0_38 = arith.constant 0 : index
    %145 = vector.load %arg5[%c0_37, %c0_38] : memref<32x32xbf16, #tpu.memory_space<vmem>>, vector<32x32xbf16>
    %cst_39 = arith.constant dense<0.000000e+00> : vector<16x32xf32>
    %146 = tpu.matmul %144, %145, %cst_39 {dimension_numbers = #tpu.dot_dimension_numbers<[1], [0], [0], [1], [0, 0, 1, 1], [], []>} : vector<16x32xbf16>, vector<32x32xbf16>, vector<16x32xf32> -> vector<16x32xf32>
    %c0_40 = arith.constant 0 : index
    %c0_41 = arith.constant 0 : index
    %147 = vector.load %arg6[%c0_40, %c0_41] : memref<1x32xf32, #tpu.memory_space<vmem>>, vector<1x32xf32>
    %148 = vector.broadcast %147 : vector<1x32xf32> to vector<16x32xf32>
    %149 = arith.addf %146, %148 : vector<16x32xf32>
    %150 = arith.addf %1, %149 : vector<16x32xf32>
    %cst_42 = arith.constant dense<0.000000e+00> : vector<16xf32>
    %151 = vector.multi_reduction <add>, %150, %cst_42 [1] : vector<16x32xf32> to vector<16xf32>
    %152 = vector.shape_cast %151 : vector<16xf32> to vector<16x1xf32>
    %cst_43 = arith.constant 3.200000e+01 : f32
    %153 = vector.broadcast %cst_43 : f32 to vector<16x1xf32>
    %154 = arith.divf %152, %153 : vector<16x1xf32>
    %155 = vector.broadcast %154 : vector<16x1xf32> to vector<16x32xf32>
    %156 = arith.subf %150, %155 : vector<16x32xf32>
    %157 = arith.mulf %156, %156 : vector<16x32xf32>
    %cst_44 = arith.constant dense<0.000000e+00> : vector<16xf32>
    %158 = vector.multi_reduction <add>, %157, %cst_44 [1] : vector<16x32xf32> to vector<16xf32>
    %159 = vector.shape_cast %158 : vector<16xf32> to vector<16x1xf32>
    %cst_45 = arith.constant 3.200000e+01 : f32
    %160 = vector.broadcast %cst_45 : f32 to vector<16x1xf32>
    %161 = arith.divf %159, %160 : vector<16x1xf32>
    %162 = vector.broadcast %154 : vector<16x1xf32> to vector<16x32xf32>
    %163 = arith.subf %150, %162 : vector<16x32xf32>
    %cst_46 = arith.constant 9.99999996E-13 : f32
    %164 = vector.broadcast %cst_46 : f32 to vector<16x1xf32>
    %165 = arith.addf %161, %164 : vector<16x1xf32>
    %166 = math.rsqrt %165 : vector<16x1xf32>
    %167 = vector.broadcast %166 : vector<16x1xf32> to vector<16x32xf32>
    %168 = arith.mulf %163, %167 : vector<16x32xf32>
    %c0_47 = arith.constant 0 : index
    %c0_48 = arith.constant 0 : index
    %169 = vector.load %arg7[%c0_47, %c0_48] : memref<1x32xf32, #tpu.memory_space<vmem>>, vector<1x32xf32>
    %170 = vector.broadcast %169 : vector<1x32xf32> to vector<16x32xf32>
    %171 = arith.mulf %168, %170 : vector<16x32xf32>
    %c0_49 = arith.constant 0 : index
    %c0_50 = arith.constant 0 : index
    %172 = vector.load %arg8[%c0_49, %c0_50] : memref<1x32xf32, #tpu.memory_space<vmem>>, vector<1x32xf32>
    %173 = vector.broadcast %172 : vector<1x32xf32> to vector<16x32xf32>
    %174 = arith.addf %171, %173 : vector<16x32xf32>
    %175 = arith.truncf %174 : vector<16x32xf32> to vector<16x32xbf16>
    %c0_51 = arith.constant 0 : index
    %c0_52 = arith.constant 0 : index
    %176 = vector.load %arg9[%c0_51, %c0_52] : memref<32x64xbf16, #tpu.memory_space<vmem>>, vector<32x64xbf16>
    %cst_53 = arith.constant dense<0.000000e+00> : vector<16x64xf32>
    %177 = tpu.matmul %175, %176, %cst_53 {dimension_numbers = #tpu.dot_dimension_numbers<[1], [0], [0], [1], [0, 0, 1, 1], [], []>} : vector<16x32xbf16>, vector<32x64xbf16>, vector<16x64xf32> -> vector<16x64xf32>
    %c0_54 = arith.constant 0 : index
    %c0_55 = arith.constant 0 : index
    %178 = vector.load %arg10[%c0_54, %c0_55] : memref<1x64xf32, #tpu.memory_space<vmem>>, vector<1x64xf32>
    %179 = vector.broadcast %178 : vector<1x64xf32> to vector<16x64xf32>
    %180 = arith.addf %177, %179 : vector<16x64xf32>
    %181 = arith.mulf %180, %180 : vector<16x64xf32>
    %182 = arith.mulf %180, %181 : vector<16x64xf32>
    %cst_56 = arith.constant 4.471500e-02 : f32
    %183 = vector.broadcast %cst_56 : f32 to vector<16x64xf32>
    %184 = arith.mulf %183, %182 : vector<16x64xf32>
    %185 = arith.addf %180, %184 : vector<16x64xf32>
    %cst_57 = arith.constant 0.797884583 : f32
    %186 = vector.broadcast %cst_57 : f32 to vector<16x64xf32>
    %187 = arith.mulf %186, %185 : vector<16x64xf32>
    %188 = math.tanh %187 : vector<16x64xf32>
    %cst_58 = arith.constant 1.000000e+00 : f32
    %189 = vector.broadcast %cst_58 : f32 to vector<16x64xf32>
    %190 = arith.addf %189, %188 : vector<16x64xf32>
    %cst_59 = arith.constant 5.000000e-01 : f32
    %191 = vector.broadcast %cst_59 : f32 to vector<16x64xf32>
    %192 = arith.mulf %191, %190 : vector<16x64xf32>
    %193 = arith.mulf %180, %192 : vector<16x64xf32>
    %194 = arith.truncf %193 : vector<16x64xf32> to vector<16x64xbf16>
    %c0_60 = arith.constant 0 : index
    %c0_61 = arith.constant 0 : index
    %195 = vector.load %arg11[%c0_60, %c0_61] : memref<64x32xbf16, #tpu.memory_space<vmem>>, vector<64x32xbf16>
    %cst_62 = arith.constant dense<0.000000e+00> : vector<16x32xf32>
    %196 = tpu.matmul %194, %195, %cst_62 {dimension_numbers = #tpu.dot_dimension_numbers<[1], [0], [0], [1], [0, 0, 1, 1], [], []>} : vector<16x64xbf16>, vector<64x32xbf16>, vector<16x32xf32> -> vector<16x32xf32>
    %c0_63 = arith.constant 0 : index
    %c0_64 = arith.constant 0 : index
    %197 = vector.load %arg12[%c0_63, %c0_64] : memref<1x32xf32, #tpu.memory_space<vmem>>, vector<1x32xf32>
    %198 = vector.broadcast %197 : vector<1x32xf32> to vector<16x32xf32>
    %199 = arith.addf %196, %198 : vector<16x32xf32>
    %200 = arith.addf %174, %199 : vector<16x32xf32>
    %cst_65 = arith.constant dense<0.000000e+00> : vector<16xf32>
    %201 = vector.multi_reduction <add>, %200, %cst_65 [1] : vector<16x32xf32> to vector<16xf32>
    %202 = vector.shape_cast %201 : vector<16xf32> to vector<16x1xf32>
    %cst_66 = arith.constant 3.200000e+01 : f32
    %203 = vector.broadcast %cst_66 : f32 to vector<16x1xf32>
    %204 = arith.divf %202, %203 : vector<16x1xf32>
    %205 = vector.broadcast %204 : vector<16x1xf32> to vector<16x32xf32>
    %206 = arith.subf %200, %205 : vector<16x32xf32>
    %207 = arith.mulf %206, %206 : vector<16x32xf32>
    %cst_67 = arith.constant dense<0.000000e+00> : vector<16xf32>
    %208 = vector.multi_reduction <add>, %207, %cst_67 [1] : vector<16x32xf32> to vector<16xf32>
    %209 = vector.shape_cast %208 : vector<16xf32> to vector<16x1xf32>
    %cst_68 = arith.constant 3.200000e+01 : f32
    %210 = vector.broadcast %cst_68 : f32 to vector<16x1xf32>
    %211 = arith.divf %209, %210 : vector<16x1xf32>
    %212 = vector.broadcast %204 : vector<16x1xf32> to vector<16x32xf32>
    %213 = arith.subf %200, %212 : vector<16x32xf32>
    %cst_69 = arith.constant 9.99999996E-13 : f32
    %214 = vector.broadcast %cst_69 : f32 to vector<16x1xf32>
    %215 = arith.addf %211, %214 : vector<16x1xf32>
    %216 = math.rsqrt %215 : vector<16x1xf32>
    %217 = vector.broadcast %216 : vector<16x1xf32> to vector<16x32xf32>
    %218 = arith.mulf %213, %217 : vector<16x32xf32>
    %c0_70 = arith.constant 0 : index
    %c0_71 = arith.constant 0 : index
    %219 = vector.load %arg13[%c0_70, %c0_71] : memref<1x32xf32, #tpu.memory_space<vmem>>, vector<1x32xf32>
    %220 = vector.broadcast %219 : vector<1x32xf32> to vector<16x32xf32>
    %221 = arith.mulf %218, %220 : vector<16x32xf32>
    %c0_72 = arith.constant 0 : index
    %c0_73 = arith.constant 0 : index
    %222 = vector.load %arg14[%c0_72, %c0_73] : memref<1x32xf32, #tpu.memory_space<vmem>>, vector<1x32xf32>
    %223 = vector.broadcast %222 : vector<1x32xf32> to vector<16x32xf32>
    %224 = arith.addf %221, %223 : vector<16x32xf32>
    %c0_74 = arith.constant 0 : index
    %c0_75 = arith.constant 0 : index
    %c0_76 = arith.constant 0 : index
    %225 = vector.load %arg15[%c0_74, %c0_75, %c0_76] : memref<1x16x32xf32, #tpu.memory_space<vmem>>, vector<1x16x32xf32>
    %226 = vector.shape_cast %225 : vector<1x16x32xf32> to vector<16x32xf32>
    %227 = vector.shape_cast %224 : vector<16x32xf32> to vector<1x16x32xf32>
    tpu.vector_store %arg15[%c0_74, %c0_75, %c0_76], %227 {strides = array<i32>} : memref<1x16x32xf32, #tpu.memory_space<vmem>>, vector<1x16x32xf32>,
    return
  }
  func.func @transform_0(%arg0: i32) -> (i32, i32, i32) {
    %c0_i32 = arith.constant 0 : i32
    %c0_i32_0 = arith.constant 0 : i32
    %c0_i32_1 = arith.constant 0 : i32
    return %arg0, %c0_i32, %c0_i32_0 : i32, i32, i32
  }
  func.func @transform_1(%arg0: i32) -> (i32, i32, i32) {
    %c0_i32 = arith.constant 0 : i32
    %c0_i32_0 = arith.constant 0 : i32
    %c0_i32_1 = arith.constant 0 : i32
    return %arg0, %c0_i32, %c0_i32_0 : i32, i32, i32
  }
  func.func @transform_2(%arg0: i32) -> (i32, i32) {
    %c0_i32 = arith.constant 0 : i32
    %c0_i32_0 = arith.constant 0 : i32
    %c0_i32_1 = arith.constant 0 : i32
    return %c0_i32, %c0_i32_0 : i32, i32
  }
  func.func @transform_3(%arg0: i32) -> (i32, i32) {
    %c0_i32 = arith.constant 0 : i32
    %c0_i32_0 = arith.constant 0 : i32
    %c0_i32_1 = arith.constant 0 : i32
    return %c0_i32, %c0_i32_0 : i32, i32
  }
  func.func @transform_4(%arg0: i32) -> (i32, i32) {
    %c0_i32 = arith.constant 0 : i32
    %c0_i32_0 = arith.constant 0 : i32
    %c0_i32_1 = arith.constant 0 : i32
    return %c0_i32, %c0_i32_0 : i32, i32
  }
  func.func @transform_5(%arg0: i32) -> (i32, i32) {
    %c0_i32 = arith.constant 0 : i32
    %c0_i32_0 = arith.constant 0 : i32
    %c0_i32_1 = arith.constant 0 : i32
    return %c0_i32, %c0_i32_0 : i32, i32
  }
  func.func @transform_6(%arg0: i32) -> (i32, i32) {
    %c0_i32 = arith.constant 0 : i32
    %c0_i32_0 = arith.constant 0 : i32
    %c0_i32_1 = arith.constant 0 : i32
    return %c0_i32, %c0_i32_0 : i32, i32
  }
  func.func @transform_7(%arg0: i32) -> (i32, i32) {
    %c0_i32 = arith.constant 0 : i32
    %c0_i32_0 = arith.constant 0 : i32
    %c0_i32_1 = arith.constant 0 : i32
    return %c0_i32, %c0_i32_0 : i32, i32
  }
  func.func @transform_8(%arg0: i32) -> (i32, i32) {
    %c0_i32 = arith.constant 0 : i32
    %c0_i32_0 = arith.constant 0 : i32
    %c0_i32_1 = arith.constant 0 : i32
    return %c0_i32, %c0_i32_0 : i32, i32
  }
  func.func @transform_9(%arg0: i32) -> (i32, i32) {
    %c0_i32 = arith.constant 0 : i32
    %c0_i32_0 = arith.constant 0 : i32
    %c0_i32_1 = arith.constant 0 : i32
    return %c0_i32, %c0_i32_0 : i32, i32
  }
  func.func @transform_10(%arg0: i32) -> (i32, i32) {
    %c0_i32 = arith.constant 0 : i32
    %c0_i32_0 = arith.constant 0 : i32
    %c0_i32_1 = arith.constant 0 : i32
    return %c0_i32, %c0_i32_0 : i32, i32
  }
  func.func @transform_11(%arg0: i32) -> (i32, i32) {
    %c0_i32 = arith.constant 0 : i32
    %c0_i32_0 = arith.constant 0 : i32
    %c0_i32_1 = arith.constant 0 : i32
    return %c0_i32, %c0_i32_0 : i32, i32
  }
  func.func @transform_12(%arg0: i32) -> (i32, i32) {
    %c0_i32 = arith.constant 0 : i32
    %c0_i32_0 = arith.constant 0 : i32
    %c0_i32_1 = arith.constant 0 : i32
    return %c0_i32, %c0_i32_0 : i32, i32
  }
  func.func @transform_13(%arg0: i32) -> (i32, i32) {
    %c0_i32 = arith.constant 0 : i32
    %c0_i32_0 = arith.constant 0 : i32
    %c0_i32_1 = arith.constant 0 : i32
    return %c0_i32, %c0_i32_0 : i32, i32
  }
  func.func @transform_14(%arg0: i32) -> (i32, i32, i32) {
    %c0_i32 = arith.constant 0 : i32
    %c0_i32_0 = arith.constant 0 : i32
    %c0_i32_1 = arith.constant 0 : i32
    return %arg0, %c0_i32, %c0_i32_0 : i32, i32, i32
  }
}

</mosaic_0001>

<llo_original>
// kernel: _lambda_.4
$region0: #{_lambda_.4}
  #allocation0 [shape = 'u32[]', space=smem, size = 0x4, offset = 0x4, fixed_abs, tag = 'smem constant byte address 0x4 - core index']
  #allocation1 [shape = 'u32[72,128]{1,0:T(1,128)}', space=vmem, size = 0x9000, scoped, tag = 'internal scratch']
  %s0 = inlined_call_operand.vmem [shape: f32[32,32], index: 0, kind: input, shape index: {}]
  %s1 = inlined_call_operand.vmem [shape: f32[1,32], index: 1, kind: input, shape index: {}]
  %s2 = inlined_call_operand.vmem [shape: f32[1,32], index: 2, kind: input, shape index: {}]
  %s3 = inlined_call_operand.vmem [shape: f32[32,32], index: 3, kind: output, shape index: {}]
  %s4 = sld [smem:[#allocation0]]
  $region22: #{_lambda_.4} parent=0
    _
  %s6 = ssub.s32 1, %s4
  %s7 = scalar_select 0, %s6, %s4
  // Predicated region
  $region2: #{_lambda_.4} parent=0 // pred_check
    _
  $region3: #{_lambda_.4} parent=0 // pred_check_branch
    %9 = sbr.rel (0) target = $region5
  $region4: #{_lambda_.4} parent=0 // pred_region
    _
  $region5: #{_lambda_.4} parent=0 // pred_fallthru
    _
  // Predicated region
  $region6: #{_lambda_.4} parent=0 // pred_check
    _
  $region7: #{_lambda_.4} parent=0 // pred_check_branch
    %11 = sbr.rel (0) target = $region9
  $region8: #{_lambda_.4} parent=0 // pred_region
    _
  $region9: #{_lambda_.4} parent=0 // pred_fallthru
    _
  // Predicated region
  $region10: #{_lambda_.4} parent=0 // pred_check
    _
  $region11: #{_lambda_.4} parent=0 // pred_check_branch
    %13 = sbr.rel (0) target = $region13
  $region12: #{_lambda_.4} parent=0 // pred_region
    _
  $region13: #{_lambda_.4} parent=0 // pred_fallthru
    _
  %v14 = vld [vmem:[%s0] sm:$0xff]
  %v15 = vld [vmem:[%s0 + $0x8] sm:$0xff]
  %v16 = vld [vmem:[%s0 + $0x10] sm:$0xff]
  %v17 = vld [vmem:[%s0 + $0x18] sm:$0xff]
  %vm18 = vcmask 261120
  %v19 = vsel %vm18, %v14, 0.0
  %20 = vadd.xlane.f32.xlu0 %v19
  %v21 = vpop.xlane.xlu0 %20
  %v22 = vsel %vm18, %v15, 0.0
  %23 = vadd.xlane.f32.xlu0 %v22
  %v24 = vpop.xlane.xlu0 %23
  %v25 = vsel %vm18, %v16, 0.0
  %26 = vadd.xlane.f32.xlu0 %v25
  %v27 = vpop.xlane.xlu0 %26
  %v28 = vsel %vm18, %v17, 0.0
  %29 = vadd.xlane.f32.xlu0 %v28
  %v30 = vpop.xlane.xlu0 %29
  %v31 = vrcp.pop 32.0
  %v32 = vmul.f32 32.0, %v31
  %v33 = vsub.f32 1.0, %v32
  %v34 = vmul.f32 %v31, %v33
  %v35 = vadd.f32 %v31, %v34
  %vm36 = vweird.f32 %v31
  %v37 = vsel %vm36, %v31, %v35
  %v38 = vmul.f32 %v21, %v37
  %v39 = vmul.f32 %v24, %v37
  %v40 = vmul.f32 %v27, %v37
  %v41 = vmul.f32 %v30, %v37
  %v42 = vsub.f32 %v14, %v38
  %v43 = vsub.f32 %v15, %v39
  %v44 = vsub.f32 %v16, %v40
  %v45 = vsub.f32 %v17, %v41
  %v46 = vmul.f32 %v42, %v42
  %v47 = vmul.f32 %v43, %v43
  %v48 = vmul.f32 %v44, %v44
  %v49 = vmul.f32 %v45, %v45
  %v50 = vsel %vm18, %v46, 0.0
  %51 = vadd.xlane.f32.xlu0 %v50
  %v52 = vpop.xlane.xlu0 %51
  %v53 = vsel %vm18, %v47, 0.0
  %54 = vadd.xlane.f32.xlu0 %v53
  %v55 = vpop.xlane.xlu0 %54
  %v56 = vsel %vm18, %v48, 0.0
  %57 = vadd.xlane.f32.xlu0 %v56
  %v58 = vpop.xlane.xlu0 %57
  %v59 = vsel %vm18, %v49, 0.0
  %60 = vadd.xlane.f32.xlu0 %v59
  %v61 = vpop.xlane.xlu0 %60
  %v62 = vmul.f32 %v52, %v37
  %v63 = vmul.f32 %v55, %v37
  %v64 = vmul.f32 %v58, %v37
  %v65 = vmul.f32 %v61, %v37
  %v66 = vadd.f32 %v62, 1e-12
  %v67 = vadd.f32 %v63, 1e-12
  %v68 = vadd.f32 %v64, 1e-12
  %v69 = vadd.f32 %v65, 1e-12
  %v70 = vrsqrt.pop %v66
  %v71 = vmul.f32 %v70, %v66
  %v72 = vmul.f32 %v71, %v70
  %v73 = vmul.f32 0.5, %v72
  %v74 = vsub.f32 1.5, %v73
  %v75 = vmul.f32 %v70, %v74
  %vm76 = vweird.f32 %v66
  %vm77 = vweird.f32 %v70
  %vm78 = vmor %vm76, %vm77
  %v79 = vsel %vm78, %v70, %v75
  %v80 = vrsqrt.pop %v67
  %v81 = vmul.f32 %v80, %v67
  %v82 = vmul.f32 %v81, %v80
  %v83 = vmul.f32 0.5, %v82
  %v84 = vsub.f32 1.5, %v83
  %v85 = vmul.f32 %v80, %v84
  %vm86 = vweird.f32 %v67
  %vm87 = vweird.f32 %v80
  %vm88 = vmor %vm86, %vm87
  %v89 = vsel %vm88, %v80, %v85
  %v90 = vrsqrt.pop %v68
  %v91 = vmul.f32 %v90, %v68
  %v92 = vmul.f32 %v91, %v90
  %v93 = vmul.f32 0.5, %v92
  %v94 = vsub.f32 1.5, %v93
  %v95 = vmul.f32 %v90, %v94
  %vm96 = vweird.f32 %v68
  %vm97 = vweird.f32 %v90
  %vm98 = vmor %vm96, %vm97
  %v99 = vsel %vm98, %v90, %v95
  %v100 = vrsqrt.pop %v69
  %v101 = vmul.f32 %v100, %v69
  %v102 = vmul.f32 %v101, %v100
  %v103 = vmul.f32 0.5, %v102
  %v104 = vsub.f32 1.5, %v103
  %v105 = vmul.f32 %v100, %v104
  %vm106 = vweird.f32 %v69
  %vm107 = vweird.f32 %v100
  %vm108 = vmor %vm106, %vm107
  %v109 = vsel %vm108, %v100, %v105
  %v110 = vmul.f32 %v42, %v79
  %v111 = vmul.f32 %v43, %v89
  %v112 = vmul.f32 %v44, %v99
  %v113 = vmul.f32 %v45, %v109
  %v114 = vld [vmem:[%s1] sm:$0x1]
  %v116 = vperm.slane %v114, 0
  %v118 = vmul.f32 %v110, %v116
  %v119 = vmul.f32 %v111, %v116
  %v120 = vmul.f32 %v112, %v116
  %v121 = vmul.f32 %v113, %v116
  %v122 = vld [vmem:[%s2] sm:$0x1]
  %v124 = vperm.slane %v122, 0
  %v126 = vadd.f32 %v118, %v124
  %v127 = vadd.f32 %v119, %v124
  %v128 = vadd.f32 %v120, %v124
  %v129 = vadd.f32 %v121, %v124
  %130 = vst.msk [vmem:[%s3] sm:$0xff] %vm18, %v126
  %131 = vst.msk [vmem:[%s3 + $0x8] sm:$0xff] %vm18, %v127
  %132 = vst.msk [vmem:[%s3 + $0x10] sm:$0xff] %vm18, %v128
  %133 = vst.msk [vmem:[%s3 + $0x18] sm:$0xff] %vm18, %v129
  // Predicated region
  $region14: #{_lambda_.4} parent=0 // pred_check
    _
  $region15: #{_lambda_.4} parent=0 // pred_check_branch
    %135 = sbr.rel (0) target = $region17
  $region16: #{_lambda_.4} parent=0 // pred_region
    _
  $region17: #{_lambda_.4} parent=0 // pred_fallthru
    _
  // Predicated region
  $region18: #{_lambda_.4} parent=0 // pred_check
    _
  $region19: #{_lambda_.4} parent=0 // pred_check_branch
    %137 = sbr.rel (0) target = $region21
  $region20: #{_lambda_.4} parent=0 // pred_region
    _
  $region21: #{_lambda_.4} parent=0 // pred_fallthru
    _

// kernel: _lambda_.7
$region0: #{_lambda_.7}
  #allocation0 [shape = 'u32[]', space=smem, size = 0x4, offset = 0x4, fixed_abs, tag = 'smem constant byte address 0x4 - core index']
  #allocation1 [shape = 'u32[72,128]{1,0:T(1,128)}', space=vmem, size = 0x9000, scoped, tag = 'internal scratch']
  #allocation2 [shape = 'f32[1,1]{1,0:T(1,128)S(1)}', space=vmem, size = 0x200, scoped, tag = 'scoped memory for _lambda_.7']
  %s0 = inlined_call_operand.vmem [shape: f32[2,16,32], index: 0, kind: input, shape index: {}]
  %s1 = inlined_call_operand.vmem [shape: s32[2,1], index: 1, kind: input, shape index: {}]
  %s2 = inlined_call_operand.vmem [shape: s32[2,1], index: 2, kind: input, shape index: {}]
  %s3 = inlined_call_operand.vmem [shape: s32[2,1], index: 3, kind: input, shape index: {}]
  %s4 = inlined_call_operand.vmem [shape: f32[1,32], index: 4, kind: input, shape index: {}]
  %s5 = inlined_call_operand.<no memory space> [shape: f32[1,1], index: 5, kind: input, shape index: {}]
  %s6 = inlined_call_operand.vmem [shape: bf16[96,96], index: 6, kind: input, shape index: {}]
  %s7 = inlined_call_operand.vmem [shape: f32[1,96], index: 7, kind: input, shape index: {}]
  %s8 = inlined_call_operand.hbm [shape: f32[2,96], index: 8, kind: output, shape index: {}]
  %s9 = sld [smem:[#allocation0]]
  $region42: #{_lambda_.7} parent=0
    _
  %s11 = ssub.s32 1, %s9
  %s12 = scalar_select 0, %s11, %s9
  %v13 = vstv %s5
  %14 = vst [vmem:[#allocation2] sm:$0x1] %v13
  $region1: #{_lambda_.7} parent=0
    #allocation3 [shape = 'u8[1024]{0}', space=vmem, size = 0x400, scoped, tag = 'output window, operand 0, single buffered']
    #allocation4 [shape = 's32[1]{0}', space=sflag, size = 0x4, scoped, tag = 'scoped memory for _lambda_.7']
    %15 = vsyncpa [#allocation4], 0
    // Predicated region
    $region2: #{_lambda_.7} parent=1 // pred_check
      _
    $region3: #{_lambda_.7} parent=1 // pred_check_branch
      %17 = sbr.rel (0) target = $region5
    $region4: #{_lambda_.7} parent=1 // pred_region
      _
    $region5: #{_lambda_.7} parent=1 // pred_fallthru
      _
    // Predicated region
    $region6: #{_lambda_.7} parent=1 // pred_check
      _
    $region7: #{_lambda_.7} parent=1 // pred_check_branch
      %19 = sbr.rel (0) target = $region9
    $region8: #{_lambda_.7} parent=1 // pred_region
      _
    $region9: #{_lambda_.7} parent=1 // pred_fallthru
      _
    // Predicated region
    $region10: #{_lambda_.7} parent=1 // pred_check
      _
    $region11: #{_lambda_.7} parent=1 // pred_check_branch
      %21 = sbr.rel (0) target = $region13
    $region12: #{_lambda_.7} parent=1 // pred_region
      _
    $region13: #{_lambda_.7} parent=1 // pred_fallthru
      _
    // Predicated region
    $region14: #{_lambda_.7} parent=1 // pred_check
      _
    $region15: #{_lambda_.7} parent=1 // pred_check_branch
      %23 = sbr.rel (0) target = $region17
    $region16: #{_lambda_.7} parent=1 // pred_region
      _
    $region17: #{_lambda_.7} parent=1 // pred_fallthru
      _
    // Predicated region
    $region18: #{_lambda_.7} parent=1 // pred_check
      _
    $region19: #{_lambda_.7} parent=1 // pred_check_branch
      %25 = sbr.rel (0) target = $region21
    $region20: #{_lambda_.7} parent=1 // pred_region
      _
    $region21: #{_lambda_.7} parent=1 // pred_fallthru
      _
    // Predicated region
    $region22: #{_lambda_.7} parent=1 // pred_check
      _
    $region23: #{_lambda_.7} parent=1 // pred_check_branch
      %27 = sbr.rel (0) target = $region25
    $region24: #{_lambda_.7} parent=1 // pred_region
      _
    $region25: #{_lambda_.7} parent=1 // pred_fallthru
      _
    // Predicated region
    $region26: #{_lambda_.7} parent=1 // pred_check
      _
    $region27: #{_lambda_.7} parent=1 // pred_check_branch
      %29 = sbr.rel (0) target = $region29
    $region28: #{_lambda_.7} parent=1 // pred_region
      _
    $region29: #{_lambda_.7} parent=1 // pred_fallthru
      _
    // Predicated region
    $region30: #{_lambda_.7} parent=1 // pred_check
      _
    $region31: #{_lambda_.7} parent=1 // pred_check_branch
      %31 = sbr.rel (0) target = $region33
    $region32: #{_lambda_.7} parent=1 // pred_region
      _
    $region33: #{_lambda_.7} parent=1 // pred_fallthru
      _
    %v33 = vld [vmem:[%s0] sm:$0xff]
    %v34 = vld [vmem:[%s0 + $0x8] sm:$0xff]
    %v35 = vld [vmem:[%s0 + $0x10] sm:$0xff]
    %v36 = vld [vmem:[%s0 + $0x18] sm:$0xff]
    %v37 = vlaneseq
    %v38 = vand.u32 %v37, 127
    %v39 = vld [vmem:[%s1] sm:$0x3]
    %40 = vset.pattern.permute.xlu0 0
    %41 = vperm.xlu0 %40, %v39
    %v42 = vpop.permute.xlu0 %41
    %vm43 = vcmp.eq.s32.totalorder %v38, %v42
    %v44 = vsel %vm43, 1, 0
    %v45 = vcvt.s32.f32 %v44
    %v46 = vld [vmem:[%s2] sm:$0x3]
    %47 = vset.pattern.permute.xlu0 0
    %48 = vperm.xlu0 %47, %v46
    %v49 = vpop.permute.xlu0 %48
    %vm50 = vcmp.eq.s32.totalorder %v38, %v49
    %v51 = vsel %vm50, 1, 0
    %v52 = vcvt.s32.f32 %v51
    %v53 = vperm.slane %v45, 0
    %v54 = vlaneseq
    %v55 = vshrl.u32 %v54, 7
    %57 = vset.pattern.permute.xlu0 %v55
    %58 = vperm.xlu0 %57, %v53
    %v59 = vpop.permute.xlu0 %58
    %v60 = vlaneseq
    %v61 = vshrl.u32 %v60, 7
    %v62 = vadd.s32 %v61, 8
    %63 = vset.pattern.permute.xlu0 %v62
    %64 = vperm.xlu0 %63, %v53
    %v65 = vpop.permute.xlu0 %64
    %v66 = vperm.slane %v45, 1
    %v67 = vlaneseq
    %v68 = vshrl.u32 %v67, 7
    %70 = vset.pattern.permute.xlu0 %v68
    %71 = vperm.xlu0 %70, %v66
    %v72 = vpop.permute.xlu0 %71
    %v73 = vlaneseq
    %v74 = vshrl.u32 %v73, 7
    %v75 = vadd.s32 %v74, 8
    %76 = vset.pattern.permute.xlu0 %v75
    %77 = vperm.xlu0 %76, %v66
    %v78 = vpop.permute.xlu0 %77
    %v79 = vmul.f32 %v59, %v33
    %v80 = vmul.f32 %v65, %v34
    %v81 = vmul.f32 %v72, %v35
    %v82 = vmul.f32 %v78, %v36
    %vm83 = vcmask 261120
    %v84 = vsel %vm83, %v79, 0.0
    %v85 = vsel %vm83, %v80, 0.0
    %v86 = vadd.f32 %v84, %v85
    %v87 = vrot.slane %v86, 4
    %v88 = vadd.f32 %v86, %v87
    %v89 = vrot.slane %v88, 2
    %v90 = vadd.f32 %v88, %v89
    %v91 = vrot.slane %v90, 1
    %v92 = vadd.f32 %v90, %v91
    %v93 = vsel %vm83, %v81, 0.0
    %v94 = vsel %vm83, %v82, 0.0
    %v95 = vadd.f32 %v93, %v94
    %v96 = vrot.slane %v95, 4
    %v97 = vadd.f32 %v95, %v96
    %v98 = vrot.slane %v97, 2
    %v99 = vadd.f32 %v97, %v98
    %v100 = vrot.slane %v99, 1
    %v101 = vadd.f32 %v99, %v100
    %v102 = vperm.slane %v52, 0
    %v103 = vlaneseq
    %v104 = vshrl.u32 %v103, 7
    %106 = vset.pattern.permute.xlu0 %v104
    %107 = vperm.xlu0 %106, %v102
    %v108 = vpop.permute.xlu0 %107
    %v109 = vlaneseq
    %v110 = vshrl.u32 %v109, 7
    %v111 = vadd.s32 %v110, 8
    %112 = vset.pattern.permute.xlu0 %v111
    %113 = vperm.xlu0 %112, %v102
    %v114 = vpop.permute.xlu0 %113
    %v115 = vperm.slane %v52, 1
    %v116 = vlaneseq
    %v117 = vshrl.u32 %v116, 7
    %119 = vset.pattern.permute.xlu0 %v117
    %120 = vperm.xlu0 %119, %v115
    %v121 = vpop.permute.xlu0 %120
    %v122 = vlaneseq
    %v123 = vshrl.u32 %v122, 7
    %v124 = vadd.s32 %v123, 8
    %125 = vset.pattern.permute.xlu0 %v124
    %126 = vperm.xlu0 %125, %v115
    %v127 = vpop.permute.xlu0 %126
    %v128 = vmul.f32 %v108, %v33
    %v129 = vmul.f32 %v114, %v34
    %v130 = vmul.f32 %v121, %v35
    %v131 = vmul.f32 %v127, %v36
    %v132 = vsel %vm83, %v128, 0.0
    %v133 = vsel %vm83, %v129, 0.0
    %v134 = vadd.f32 %v132, %v133
    %v135 = vrot.slane %v134, 4
    %v136 = vadd.f32 %v134, %v135
    %v137 = vrot.slane %v136, 2
    %v138 = vadd.f32 %v136, %v137
    %v139 = vrot.slane %v138, 1
    %v140 = vadd.f32 %v138, %v139
    %v141 = vsel %vm83, %v130, 0.0
    %v142 = vsel %vm83, %v131, 0.0
    %v143 = vadd.f32 %v141, %v142
    %v144 = vrot.slane %v143, 4
    %v145 = vadd.f32 %v143, %v144
    %v146 = vrot.slane %v145, 2
    %v147 = vadd.f32 %v145, %v146
    %v148 = vrot.slane %v147, 1
    %v149 = vadd.f32 %v147, %v148
    %v150 = vld [vmem:[%s4] sm:$0x1]
    %v152 = vperm.slane %v150, 0
    %v154 = vmul.f32 %v33, %v152
    %v155 = vmul.f32 %v34, %v152
    %v156 = vmul.f32 %v35, %v152
    %v157 = vmul.f32 %v36, %v152
    %v158 = vsel %vm83, %v154, 0.0
    %159 = vadd.xlane.f32.xlu0 %v158
    %v160 = vpop.xlane.xlu0 %159
    %v161 = vsel %vm83, %v155, 0.0
    %162 = vadd.xlane.f32.xlu0 %v161
    %v163 = vpop.xlane.xlu0 %162
    %v164 = vsel %vm83, %v156, 0.0
    %165 = vadd.xlane.f32.xlu0 %v164
    %v166 = vpop.xlane.xlu0 %165
    %v167 = vsel %vm83, %v157, 0.0
    %168 = vadd.xlane.f32.xlu0 %v167
    %v169 = vpop.xlane.xlu0 %168
    %v170 = vld [vmem:[#allocation2] sm:$0x1]
    %v172 = vperm.slane %v170, 0
    %173 = vset.pattern.permute.xlu0 0
    %174 = vperm.xlu0 %173, %v172
    %v175 = vpop.permute.xlu0 %174
    %v177 = vadd.f32 %v160, %v175
    %v178 = vadd.f32 %v163, %v175
    %v179 = vadd.f32 %v166, %v175
    %v180 = vadd.f32 %v169, %v175
    %v181 = vld [vmem:[%s3] sm:$0x3]
    %182 = vset.pattern.permute.xlu0 0
    %183 = vperm.xlu0 %182, %v181
    %v184 = vpop.permute.xlu0 %183
    %vm185 = vcmp.ge.s32.totalorder %v38, %v184
    %v190 = vperm.slane %v177, %v38
    %v191 = vadd.s32 %v38, 4294967288
    %v192 = vperm.slane %v178, %v191
    %vm193 = vcmask 130112
    %v194 = vsel %vm193, %v192, %v190
    %v195 = vperm.slane %v179, %v38
    %v196 = vperm.slane %v180, %v191
    %v197 = vsel %vm193, %v196, %v195
    %vm198 = vcmask 1041409
    %v199 = vsel %vm198, %v197, %v194
    %v201 = vsel %vm185, 1e-09, %v199
    %vm202 = vcmask 123904
    %v203 = vsel %vm202, %v201, -inf
    %204 = vmax.xlane.f32.xlu0 %v203
    %v205 = vpop.xlane.xlu0 %204
    %v206 = vsub.f32 %v201, %v205
    %v207 = vmul.f32 %v206, 1.442695
    %v208 = vpow.pop %v207
    %v209 = vsel %vm202, %v208, 0.0
    %210 = vadd.xlane.f32.xlu0 %v209
    %v211 = vpop.xlane.xlu0 %210
    %v212 = vrcp.pop %v211
    %v213 = vmul.f32 %v211, %v212
    %v214 = vsub.f32 1.0, %v213
    %v215 = vmul.f32 %v212, %v214
    %v216 = vadd.f32 %v212, %v215
    %vm217 = vweird.f32 %v211
    %vm218 = vweird.f32 %v212
    %vm219 = vmor %vm217, %vm218
    %v220 = vsel %vm219, %v212, %v216
    %v221 = vand.u32 2147483647, %v211
    %vm222 = vcmp.eq.f32.partialorder %v221, 8.507059e+37
    %v223 = vand.u32 %v211, 2147483648
    %v224 = vor.u32 1.1754944e-38, %v223
    %v225 = vsel %vm222, %v224, %v220
    %v226 = vmul.f32 %v208, %v225
    %v227 = vperm.slane %v226, 0
    %v228 = vlaneseq
    %v229 = vshrl.u32 %v228, 7
    %231 = vset.pattern.permute.xlu0 %v229
    %232 = vperm.xlu0 %231, %v227
    %v233 = vpop.permute.xlu0 %232
    %v234 = vlaneseq
    %v235 = vshrl.u32 %v234, 7
    %v236 = vadd.s32 %v235, 8
    %237 = vset.pattern.permute.xlu0 %v236
    %238 = vperm.xlu0 %237, %v227
    %v239 = vpop.permute.xlu0 %238
    %v240 = vperm.slane %v226, 1
    %v241 = vlaneseq
    %v242 = vshrl.u32 %v241, 7
    %244 = vset.pattern.permute.xlu0 %v242
    %245 = vperm.xlu0 %244, %v240
    %v246 = vpop.permute.xlu0 %245
    %v247 = vlaneseq
    %v248 = vshrl.u32 %v247, 7
    %v249 = vadd.s32 %v248, 8
    %250 = vset.pattern.permute.xlu0 %v249
    %251 = vperm.xlu0 %250, %v240
    %v252 = vpop.permute.xlu0 %251
    %v253 = vmul.f32 %v233, %v33
    %v254 = vmul.f32 %v239, %v34
    %v255 = vmul.f32 %v246, %v35
    %v256 = vmul.f32 %v252, %v36
    %v257 = vsel %vm83, %v253, 0.0
    %v258 = vsel %vm83, %v254, 0.0
    %v259 = vadd.f32 %v257, %v258
    %v260 = vrot.slane %v259, 4
    %v261 = vadd.f32 %v259, %v260
    %v262 = vrot.slane %v261, 2
    %v263 = vadd.f32 %v261, %v262
    %v264 = vrot.slane %v263, 1
    %v265 = vadd.f32 %v263, %v264
    %v266 = vsel %vm83, %v255, 0.0
    %v267 = vsel %vm83, %v256, 0.0
    %v268 = vadd.f32 %v266, %v267
    %v269 = vrot.slane %v268, 4
    %v270 = vadd.f32 %v268, %v269
    %v271 = vrot.slane %v270, 2
    %v272 = vadd.f32 %v270, %v271
    %v273 = vrot.slane %v272, 1
    %v274 = vadd.f32 %v272, %v273
    %v277 = vsel %vm198, %v101, %v92
    %v281 = vsel %vm198, %v149, %v140
    %282 = vrot.lane.b32.xlu0 %v281, 32
    %v283 = vpop.permute.xlu0 %282
    %v287 = vsel %vm198, %v274, %v265
    %288 = vrot.lane.b32.xlu0 %v287, 64
    %v289 = vpop.permute.xlu0 %288
    %v291 = vsel %vm83, %v277, %v283
    %vm292 = vcmask 523264
    %v293 = vsel %vm292, %v291, %v289
    %v294 = vpack.c.bf16 %v293, %v293
    %v295 = vld [vmem:[%s6] sm:$0xf]
    %v296 = vld [vmem:[%s6 + $0x4] sm:$0xf]
    %v297 = vld [vmem:[%s6 + $0x8] sm:$0xf]
    %v298 = vld [vmem:[%s6 + $0xc] sm:$0xf]
    %v299 = vld [vmem:[%s6 + $0x10] sm:$0xf]
    %v300 = vld [vmem:[%s6 + $0x14] sm:$0xf]
    %v301 = vld [vmem:[%s6 + $0x18] sm:$0xf]
    %v302 = vld [vmem:[%s6 + $0x1c] sm:$0xf]
    %v303 = vld [vmem:[%s6 + $0x20] sm:$0xf]
    %v304 = vld [vmem:[%s6 + $0x24] sm:$0xf]
    %v305 = vld [vmem:[%s6 + $0x28] sm:$0xf]
    %v306 = vld [vmem:[%s6 + $0x2c] sm:$0xf]
    %v307 = vld [vmem:[%s7] sm:$0x1]
    %v309 = vperm.slane %v307, 0
    %v323 = vunpack.c.l.b16 %v295
    %v324 = vunpack.c.l.b16 %v296
    %v325 = vunpack.c.l.b16 %v297
    %v326 = vunpack.c.l.b16 %v298
    %v327 = vunpack.c.l.b16 %v299
    %v328 = vunpack.c.l.b16 %v300
    %v329 = vunpack.c.l.b16 %v301
    %v330 = vunpack.c.l.b16 %v302
    %v331 = vunpack.c.l.b16 %v303
    %v332 = vunpack.c.l.b16 %v304
    %v333 = vunpack.c.l.b16 %v305
    %v334 = vunpack.c.l.b16 %v306
    %v335 = vpack.c.b16 %v324, %v323
    %v336 = vpack.c.b16 %v326, %v325
    %v337 = vpack.c.b16 %v328, %v327
    %v338 = vpack.c.b16 %v330, %v329
    %v339 = vpack.c.b16 %v332, %v331
    %v340 = vpack.c.b16 %v334, %v333
    %vm347 = vcmask 785408
    %v349 = vsel %vm347, %v294, 0
    %351 = vmatpush.bf16.msra.mxu0 0
    %352 = vmatpush.bf16.msra.mxu0 0
    %353 = vmatpush.bf16.msra.mxu0 %v340
    %354 = vmatpush.bf16.msra.mxu0 %v339
    %355 = vmatpush.bf16.msra.mxu0 %v338
    %356 = vmatpush.bf16.msra.mxu0 %v337
    %357 = vmatpush.bf16.msra.mxu0 %v336
    %358 = vmatpush.bf16.msra.mxu0 %v335
    %359 = vmatmul.bf16.gmra.mxu0 %v349
    %v360 = vpop.f32.mrf.mxu0
    %v361 = vadd.f32 %v309, %v360
    %v362 = vpop.f32.mrf.mxu0
    %363 = vdwg.mxu0
    %vm364 = vcmask 779264
    %365 = vst.msk [vmem:[#allocation3] sm:$0x3] %vm364, %v361
    // Predicated region
    $region34: #{_lambda_.7} parent=1 // pred_check
      _
    $region35: #{_lambda_.7} parent=1 // pred_check_branch
      %367 = sbr.rel (0) target = $region37
    $region36: #{_lambda_.7} parent=1 // pred_region
      %369 = vsyncadd [#allocation4], 0
      %s371 = sshll.u32 [#allocation3], 4
      %s372 = int_to_ptr.vmem [resolvable:$true] %s371
      %s373 = sshll.u32 %s8, 4
      %s374 = int_to_ptr.hbm [resolvable:$true] %s373
      %376 = dma.vmem_to_hbm [thread:$0]  %s372, 32, %s374, [#allocation4]
    $region37: #{_lambda_.7} parent=1 // pred_fallthru
      _
    // Predicated region
    $region38: #{_lambda_.7} parent=1 // pred_check
      _
    $region39: #{_lambda_.7} parent=1 // pred_check_branch
      %378 = sbr.rel (0) target = $region41
    $region40: #{_lambda_.7} parent=1 // pred_region
      %380 = dma.done [#allocation4], 32
    $region41: #{_lambda_.7} parent=1 // pred_fallthru
      _
    %381 = vsyncpa [#allocation4], 1

// kernel: _lambda_.5
$region0: #{_lambda_.5}
  #allocation0 [shape = 'u32[]', space=smem, size = 0x4, offset = 0x4, fixed_abs, tag = 'smem constant byte address 0x4 - core index']
  #allocation1 [shape = 'u32[72,128]{1,0:T(1,128)}', space=vmem, size = 0x9000, scoped, tag = 'internal scratch']
  %s0 = inlined_call_operand.vmem [shape: f32[2,16,32], index: 0, kind: input, shape index: {}]
  %s1 = inlined_call_operand.vmem [shape: f32[2,1,16], index: 1, kind: input, shape index: {}]
  %s2 = inlined_call_operand.vmem [shape: bf16[32,96], index: 2, kind: input, shape index: {}]
  %s3 = inlined_call_operand.vmem [shape: f32[1,96], index: 3, kind: input, shape index: {}]
  %s4 = inlined_call_operand.vmem [shape: bf16[32,32], index: 4, kind: input, shape index: {}]
  %s5 = inlined_call_operand.vmem [shape: f32[1,32], index: 5, kind: input, shape index: {}]
  %s6 = inlined_call_operand.vmem [shape: f32[1,32], index: 6, kind: input, shape index: {}]
  %s7 = inlined_call_operand.vmem [shape: f32[1,32], index: 7, kind: input, shape index: {}]
  %s8 = inlined_call_operand.vmem [shape: bf16[32,64], index: 8, kind: input, shape index: {}]
  %s9 = inlined_call_operand.vmem [shape: f32[1,64], index: 9, kind: input, shape index: {}]
  %s10 = inlined_call_operand.vmem [shape: bf16[64,32], index: 10, kind: input, shape index: {}]
  %s11 = inlined_call_operand.vmem [shape: f32[1,32], index: 11, kind: input, shape index: {}]
  %s12 = inlined_call_operand.vmem [shape: f32[1,32], index: 12, kind: input, shape index: {}]
  %s13 = inlined_call_operand.vmem [shape: f32[1,32], index: 13, kind: input, shape index: {}]
  %s14 = inlined_call_operand.vmem [shape: f32[2,16,32], index: 14, kind: output, shape index: {}]
  %s15 = sld [smem:[#allocation0]]
  $region89: #{_lambda_.5} parent=0
    _
  %s17 = ssub.s32 1, %s15
  %s18 = scalar_select 0, %s17, %s15
  loop: start=0, step=1, limit=4
  $region2: #{_lambda_.5} parent=0 // loop_pre_header
    _
  $region3: #{_lambda_.5} parent=0 // loop_header
    %s20 = sphi 0, %s24
    %p21 = scmp.ge.s32.totalorder %s20, 4
    %s30 = sphi 0, %s32
    %s33 = sphi 0, %s30
    %s34 = sphi 0, %s33
    %s50 = sphi 0, %s34
    %s56 = sphi 0, %s58
    %s59 = sphi 0, %s56
    %s60 = sphi 0, %s59
    %s76 = sphi 0, %s60
    %s80 = sphi 0, %s80
    %s82 = sphi 0, %s80
    %s83 = sphi 0, %s82
    %s97 = sphi 0, %s83
    %s101 = sphi 0, %s101
    %s103 = sphi 0, %s101
    %s104 = sphi 0, %s103
    %s118 = sphi 0, %s104
    %s122 = sphi 0, %s122
    %s124 = sphi 0, %s122
    %s125 = sphi 0, %s124
    %s139 = sphi 0, %s125
    %s143 = sphi 0, %s143
    %s145 = sphi 0, %s143
    %s146 = sphi 0, %s145
    %s160 = sphi 0, %s146
    %s164 = sphi 0, %s164
    %s166 = sphi 0, %s164
    %s167 = sphi 0, %s166
    %s181 = sphi 0, %s167
    %s185 = sphi 0, %s185
    %s187 = sphi 0, %s185
    %s188 = sphi 0, %s187
    %s202 = sphi 0, %s188
    %s206 = sphi 0, %s206
    %s208 = sphi 0, %s206
    %s209 = sphi 0, %s208
    %s223 = sphi 0, %s209
    %s227 = sphi 0, %s227
    %s229 = sphi 0, %s227
    %s230 = sphi 0, %s229
    %s244 = sphi 0, %s230
    %s248 = sphi 0, %s248
    %s250 = sphi 0, %s248
    %s251 = sphi 0, %s250
    %s265 = sphi 0, %s251
    %s269 = sphi 0, %s269
    %s271 = sphi 0, %s269
    %s272 = sphi 0, %s271
    %s286 = sphi 0, %s272
    %s290 = sphi 0, %s290
    %s292 = sphi 0, %s290
    %s293 = sphi 0, %s292
    %s307 = sphi 0, %s293
    %s311 = sphi 0, %s311
    %s313 = sphi 0, %s311
    %s314 = sphi 0, %s313
    %s328 = sphi 0, %s314
    %s334 = sphi 0, %s336
    %s337 = sphi 0, %s334
    %s338 = sphi 0, %s337
    %s354 = sphi 0, %s338
  $region4: #{_lambda_.5} parent=0 // loop_header_branch
    %23 = sbr.rel (%p21) target = $region8
  $region5: #{_lambda_.5} parent=0 // loop_body
    %s25 = ssub.s32 %s20, 1
    %s26 = ssub.s32 %s20, 2
    %s27 = sadd.s32 %s20, 1
    %s28 = ssub.s32 %s20, %s27
    %p29 = scmp.eq.s32.totalorder %s28, 0
    %s31 = sadd.s32 %s30, 1
    %s32 = scalar_select %p29, %s30, %s31
    %p35 = pneg %p29
    %p36 = scmp.eq.s32.totalorder %s20, 1
    %p37 = por %p35, %p36
    %p38 = scmp.ne.s32.totalorder %s30, %s33
    %p39 = scmp.eq.s32.totalorder %s20, 0
    %p40 = por %p38, %p39
    %p41 = scmp.ne.s32.totalorder %s30, %s33
    %p42 = scmp.eq.s32.totalorder %s25, 1
    %p43 = por %p41, %p42
    %p44 = scmp.ne.s32.totalorder %s33, %s34
    %p45 = scmp.eq.s32.totalorder %s25, 0
    %p46 = por %p44, %p45
    %p47 = scmp.ne.s32.totalorder %s33, %s34
    %p48 = scmp.eq.s32.totalorder %s26, 1
    %p49 = por %p47, %p48
    %p51 = scmp.ne.s32.totalorder %s34, %s50
    %p52 = scmp.eq.s32.totalorder %s26, 0
    %p53 = por %p51, %p52
    %s54 = ssub.s32 %s20, %s27
    %p55 = scmp.eq.s32.totalorder %s54, 0
    %s57 = sadd.s32 %s56, 1
    %s58 = scalar_select %p55, %s56, %s57
    %p61 = pneg %p55
    %p62 = scmp.eq.s32.totalorder %s20, 1
    %p63 = por %p61, %p62
    %p64 = scmp.ne.s32.totalorder %s56, %s59
    %p65 = scmp.eq.s32.totalorder %s20, 0
    %p66 = por %p64, %p65
    %p67 = scmp.ne.s32.totalorder %s56, %s59
    %p68 = scmp.eq.s32.totalorder %s25, 1
    %p69 = por %p67, %p68
    %p70 = scmp.ne.s32.totalorder %s59, %s60
    %p71 = scmp.eq.s32.totalorder %s25, 0
    %p72 = por %p70, %p71
    %p73 = scmp.ne.s32.totalorder %s59, %s60
    %p74 = scmp.eq.s32.totalorder %s26, 1
    %p75 = por %p73, %p74
    %p77 = scmp.ne.s32.totalorder %s60, %s76
    %p78 = scmp.eq.s32.totalorder %s26, 0
    %p79 = por %p77, %p78
    %s81 = sadd.s32 %s80, 1
    %p84 = scmp.eq.s32.totalorder %s20, 1
    %p85 = scmp.ne.s32.totalorder %s80, %s82
    %p86 = scmp.eq.s32.totalorder %s20, 0
    %p87 = por %p85, %p86
    %p88 = scmp.ne.s32.totalorder %s80, %s82
    %p89 = scmp.eq.s32.totalorder %s25, 1
    %p90 = por %p88, %p89
    %p91 = scmp.ne.s32.totalorder %s82, %s83
    %p92 = scmp.eq.s32.totalorder %s25, 0
    %p93 = por %p91, %p92
    %p94 = scmp.ne.s32.totalorder %s82, %s83
    %p95 = scmp.eq.s32.totalorder %s26, 1
    %p96 = por %p94, %p95
    %p98 = scmp.ne.s32.totalorder %s83, %s97
    %p99 = scmp.eq.s32.totalorder %s26, 0
    %p100 = por %p98, %p99
    %s102 = sadd.s32 %s101, 1
    %p105 = scmp.eq.s32.totalorder %s20, 1
    %p106 = scmp.ne.s32.totalorder %s101, %s103
    %p107 = scmp.eq.s32.totalorder %s20, 0
    %p108 = por %p106, %p107
    %p109 = scmp.ne.s32.totalorder %s101, %s103
    %p110 = scmp.eq.s32.totalorder %s25, 1
    %p111 = por %p109, %p110
    %p112 = scmp.ne.s32.totalorder %s103, %s104
    %p113 = scmp.eq.s32.totalorder %s25, 0
    %p114 = por %p112, %p113
    %p115 = scmp.ne.s32.totalorder %s103, %s104
    %p116 = scmp.eq.s32.totalorder %s26, 1
    %p117 = por %p115, %p116
    %p119 = scmp.ne.s32.totalorder %s104, %s118
    %p120 = scmp.eq.s32.totalorder %s26, 0
    %p121 = por %p119, %p120
    %s123 = sadd.s32 %s122, 1
    %p126 = scmp.eq.s32.totalorder %s20, 1
    %p127 = scmp.ne.s32.totalorder %s122, %s124
    %p128 = scmp.eq.s32.totalorder %s20, 0
    %p129 = por %p127, %p128
    %p130 = scmp.ne.s32.totalorder %s122, %s124
    %p131 = scmp.eq.s32.totalorder %s25, 1
    %p132 = por %p130, %p131
    %p133 = scmp.ne.s32.totalorder %s124, %s125
    %p134 = scmp.eq.s32.totalorder %s25, 0
    %p135 = por %p133, %p134
    %p136 = scmp.ne.s32.totalorder %s124, %s125
    %p137 = scmp.eq.s32.totalorder %s26, 1
    %p138 = por %p136, %p137
    %p140 = scmp.ne.s32.totalorder %s125, %s139
    %p141 = scmp.eq.s32.totalorder %s26, 0
    %p142 = por %p140, %p141
    %s144 = sadd.s32 %s143, 1
    %p147 = scmp.eq.s32.totalorder %s20, 1
    %p148 = scmp.ne.s32.totalorder %s143, %s145
    %p149 = scmp.eq.s32.totalorder %s20, 0
    %p150 = por %p148, %p149
    %p151 = scmp.ne.s32.totalorder %s143, %s145
    %p152 = scmp.eq.s32.totalorder %s25, 1
    %p153 = por %p151, %p152
    %p154 = scmp.ne.s32.totalorder %s145, %s146
    %p155 = scmp.eq.s32.totalorder %s25, 0
    %p156 = por %p154, %p155
    %p157 = scmp.ne.s32.totalorder %s145, %s146
    %p158 = scmp.eq.s32.totalorder %s26, 1
    %p159 = por %p157, %p158
    %p161 = scmp.ne.s32.totalorder %s146, %s160
    %p162 = scmp.eq.s32.totalorder %s26, 0
    %p163 = por %p161, %p162
    %s165 = sadd.s32 %s164, 1
    %p168 = scmp.eq.s32.totalorder %s20, 1
    %p169 = scmp.ne.s32.totalorder %s164, %s166
    %p170 = scmp.eq.s32.totalorder %s20, 0
    %p171 = por %p169, %p170
    %p172 = scmp.ne.s32.totalorder %s164, %s166
    %p173 = scmp.eq.s32.totalorder %s25, 1
    %p174 = por %p172, %p173
    %p175 = scmp.ne.s32.totalorder %s166, %s167
    %p176 = scmp.eq.s32.totalorder %s25, 0
    %p177 = por %p175, %p176
    %p178 = scmp.ne.s32.totalorder %s166, %s167
    %p179 = scmp.eq.s32.totalorder %s26, 1
    %p180 = por %p178, %p179
    %p182 = scmp.ne.s32.totalorder %s167, %s181
    %p183 = scmp.eq.s32.totalorder %s26, 0
    %p184 = por %p182, %p183
    %s186 = sadd.s32 %s185, 1
    %p189 = scmp.eq.s32.totalorder %s20, 1
    %p190 = scmp.ne.s32.totalorder %s185, %s187
    %p191 = scmp.eq.s32.totalorder %s20, 0
    %p192 = por %p190, %p191
    %p193 = scmp.ne.s32.totalorder %s185, %s187
    %p194 = scmp.eq.s32.totalorder %s25, 1
    %p195 = por %p193, %p194
    %p196 = scmp.ne.s32.totalorder %s187, %s188
    %p197 = scmp.eq.s32.totalorder %s25, 0
    %p198 = por %p196, %p197
    %p199 = scmp.ne.s32.totalorder %s187, %s188
    %p200 = scmp.eq.s32.totalorder %s26, 1
    %p201 = por %p199, %p200
    %p203 = scmp.ne.s32.totalorder %s188, %s202
    %p204 = scmp.eq.s32.totalorder %s26, 0
    %p205 = por %p203, %p204
    %s207 = sadd.s32 %s206, 1
    %p210 = scmp.eq.s32.totalorder %s20, 1
    %p211 = scmp.ne.s32.totalorder %s206, %s208
    %p212 = scmp.eq.s32.totalorder %s20, 0
    %p213 = por %p211, %p212
    %p214 = scmp.ne.s32.totalorder %s206, %s208
    %p215 = scmp.eq.s32.totalorder %s25, 1
    %p216 = por %p214, %p215
    %p217 = scmp.ne.s32.totalorder %s208, %s209
    %p218 = scmp.eq.s32.totalorder %s25, 0
    %p219 = por %p217, %p218
    %p220 = scmp.ne.s32.totalorder %s208, %s209
    %p221 = scmp.eq.s32.totalorder %s26, 1
    %p222 = por %p220, %p221
    %p224 = scmp.ne.s32.totalorder %s209, %s223
    %p225 = scmp.eq.s32.totalorder %s26, 0
    %p226 = por %p224, %p225
    %s228 = sadd.s32 %s227, 1
    %p231 = scmp.eq.s32.totalorder %s20, 1
    %p232 = scmp.ne.s32.totalorder %s227, %s229
    %p233 = scmp.eq.s32.totalorder %s20, 0
    %p234 = por %p232, %p233
    %p235 = scmp.ne.s32.totalorder %s227, %s229
    %p236 = scmp.eq.s32.totalorder %s25, 1
    %p237 = por %p235, %p236
    %p238 = scmp.ne.s32.totalorder %s229, %s230
    %p239 = scmp.eq.s32.totalorder %s25, 0
    %p240 = por %p238, %p239
    %p241 = scmp.ne.s32.totalorder %s229, %s230
    %p242 = scmp.eq.s32.totalorder %s26, 1
    %p243 = por %p241, %p242
    %p245 = scmp.ne.s32.totalorder %s230, %s244
    %p246 = scmp.eq.s32.totalorder %s26, 0
    %p247 = por %p245, %p246
    %s249 = sadd.s32 %s248, 1
    %p252 = scmp.eq.s32.totalorder %s20, 1
    %p253 = scmp.ne.s32.totalorder %s248, %s250
    %p254 = scmp.eq.s32.totalorder %s20, 0
    %p255 = por %p253, %p254
    %p256 = scmp.ne.s32.totalorder %s248, %s250
    %p257 = scmp.eq.s32.totalorder %s25, 1
    %p258 = por %p256, %p257
    %p259 = scmp.ne.s32.totalorder %s250, %s251
    %p260 = scmp.eq.s32.totalorder %s25, 0
    %p261 = por %p259, %p260
    %p262 = scmp.ne.s32.totalorder %s250, %s251
    %p263 = scmp.eq.s32.totalorder %s26, 1
    %p264 = por %p262, %p263
    %p266 = scmp.ne.s32.totalorder %s251, %s265
    %p267 = scmp.eq.s32.totalorder %s26, 0
    %p268 = por %p266, %p267
    %s270 = sadd.s32 %s269, 1
    %p273 = scmp.eq.s32.totalorder %s20, 1
    %p274 = scmp.ne.s32.totalorder %s269, %s271
    %p275 = scmp.eq.s32.totalorder %s20, 0
    %p276 = por %p274, %p275
    %p277 = scmp.ne.s32.totalorder %s269, %s271
    %p278 = scmp.eq.s32.totalorder %s25, 1
    %p279 = por %p277, %p278
    %p280 = scmp.ne.s32.totalorder %s271, %s272
    %p281 = scmp.eq.s32.totalorder %s25, 0
    %p282 = por %p280, %p281
    %p283 = scmp.ne.s32.totalorder %s271, %s272
    %p284 = scmp.eq.s32.totalorder %s26, 1
    %p285 = por %p283, %p284
    %p287 = scmp.ne.s32.totalorder %s272, %s286
    %p288 = scmp.eq.s32.totalorder %s26, 0
    %p289 = por %p287, %p288
    %s291 = sadd.s32 %s290, 1
    %p294 = scmp.eq.s32.totalorder %s20, 1
    %p295 = scmp.ne.s32.totalorder %s290, %s292
    %p296 = scmp.eq.s32.totalorder %s20, 0
    %p297 = por %p295, %p296
    %p298 = scmp.ne.s32.totalorder %s290, %s292
    %p299 = scmp.eq.s32.totalorder %s25, 1
    %p300 = por %p298, %p299
    %p301 = scmp.ne.s32.totalorder %s292, %s293
    %p302 = scmp.eq.s32.totalorder %s25, 0
    %p303 = por %p301, %p302
    %p304 = scmp.ne.s32.totalorder %s292, %s293
    %p305 = scmp.eq.s32.totalorder %s26, 1
    %p306 = por %p304, %p305
    %p308 = scmp.ne.s32.totalorder %s293, %s307
    %p309 = scmp.eq.s32.totalorder %s26, 0
    %p310 = por %p308, %p309
    %s312 = sadd.s32 %s311, 1
    %p315 = scmp.eq.s32.totalorder %s20, 1
    %p316 = scmp.ne.s32.totalorder %s311, %s313
    %p317 = scmp.eq.s32.totalorder %s20, 0
    %p318 = por %p316, %p317
    %p319 = scmp.ne.s32.totalorder %s311, %s313
    %p320 = scmp.eq.s32.totalorder %s25, 1
    %p321 = por %p319, %p320
    %p322 = scmp.ne.s32.totalorder %s313, %s314
    %p323 = scmp.eq.s32.totalorder %s25, 0
    %p324 = por %p322, %p323
    %p325 = scmp.ne.s32.totalorder %s313, %s314
    %p326 = scmp.eq.s32.totalorder %s26, 1
    %p327 = por %p325, %p326
    %p329 = scmp.ne.s32.totalorder %s314, %s328
    %p330 = scmp.eq.s32.totalorder %s26, 0
    %p331 = por %p329, %p330
    %s332 = ssub.s32 %s20, %s27
    %p333 = scmp.eq.s32.totalorder %s332, 0
    %s335 = sadd.s32 %s334, 1
    %s336 = scalar_select %p333, %s334, %s335
    %p339 = pneg %p333
    %p340 = scmp.eq.s32.totalorder %s20, 1
    %p341 = por %p339, %p340
    %p342 = scmp.ne.s32.totalorder %s334, %s337
    %p343 = scmp.eq.s32.totalorder %s20, 0
    %p344 = por %p342, %p343
    %p345 = scmp.ne.s32.totalorder %s334, %s337
    %p346 = scmp.eq.s32.totalorder %s25, 1
    %p347 = por %p345, %p346
    %p348 = scmp.ne.s32.totalorder %s337, %s338
    %p349 = scmp.eq.s32.totalorder %s25, 0
    %p350 = por %p348, %p349
    %p351 = scmp.ne.s32.totalorder %s337, %s338
    %p352 = scmp.eq.s32.totalorder %s26, 1
    %p353 = por %p351, %p352
    %p355 = scmp.ne.s32.totalorder %s338, %s354
    %p356 = scmp.eq.s32.totalorder %s26, 0
    %p357 = por %p355, %p356
    %p358 = scmp.le.s32.totalorder 1, %s20
    %p359 = scmp.lt.s32.totalorder %s20, 3
    %p360 = pnand %p358, %p359
    %p361 = pneg %p360
    // Predicated region
    $region9: #{_lambda_.5} parent=5 // pred_check
      _
    $region10: #{_lambda_.5} parent=5 // pred_check_branch
      %363 = sbr.rel (%p360) target = $region12
    $region11: #{_lambda_.5} parent=5 // pred_region
      %s364 = ssub.s32 %s20, 1
      // Predicated region
      $region13: #{_lambda_.5} parent=11 // pred_check
        %p365 = pneg %p93
      $region14: #{_lambda_.5} parent=11 // pred_check_branch
        %367 = sbr.rel (%p365) target = $region16
      $region15: #{_lambda_.5} parent=11 // pred_region
        _
      $region16: #{_lambda_.5} parent=11 // pred_fallthru
        _
      // Predicated region
      $region17: #{_lambda_.5} parent=11 // pred_check
        %p368 = pneg %p114
      $region18: #{_lambda_.5} parent=11 // pred_check_branch
        %370 = sbr.rel (%p368) target = $region20
      $region19: #{_lambda_.5} parent=11 // pred_region
        _
      $region20: #{_lambda_.5} parent=11 // pred_fallthru
        _
      // Predicated region
      $region21: #{_lambda_.5} parent=11 // pred_check
        %p371 = pneg %p135
      $region22: #{_lambda_.5} parent=11 // pred_check_branch
        %373 = sbr.rel (%p371) target = $region24
      $region23: #{_lambda_.5} parent=11 // pred_region
        _
      $region24: #{_lambda_.5} parent=11 // pred_fallthru
        _
      // Predicated region
      $region25: #{_lambda_.5} parent=11 // pred_check
        %p374 = pneg %p156
      $region26: #{_lambda_.5} parent=11 // pred_check_branch
        %376 = sbr.rel (%p374) target = $region28
      $region27: #{_lambda_.5} parent=11 // pred_region
        _
      $region28: #{_lambda_.5} parent=11 // pred_fallthru
        _
      // Predicated region
      $region29: #{_lambda_.5} parent=11 // pred_check
        %p377 = pneg %p177
      $region30: #{_lambda_.5} parent=11 // pred_check_branch
        %379 = sbr.rel (%p377) target = $region32
      $region31: #{_lambda_.5} parent=11 // pred_region
        _
      $region32: #{_lambda_.5} parent=11 // pred_fallthru
        _
      // Predicated region
      $region33: #{_lambda_.5} parent=11 // pred_check
        %p380 = pneg %p198
      $region34: #{_lambda_.5} parent=11 // pred_check_branch
        %382 = sbr.rel (%p380) target = $region36
      $region35: #{_lambda_.5} parent=11 // pred_region
        _
      $region36: #{_lambda_.5} parent=11 // pred_fallthru
        _
      // Predicated region
      $region37: #{_lambda_.5} parent=11 // pred_check
        %p383 = pneg %p219
      $region38: #{_lambda_.5} parent=11 // pred_check_branch
        %385 = sbr.rel (%p383) target = $region40
      $region39: #{_lambda_.5} parent=11 // pred_region
        _
      $region40: #{_lambda_.5} parent=11 // pred_fallthru
        _
      // Predicated region
      $region41: #{_lambda_.5} parent=11 // pred_check
        %p386 = pneg %p240
      $region42: #{_lambda_.5} parent=11 // pred_check_branch
        %388 = sbr.rel (%p386) target = $region44
      $region43: #{_lambda_.5} parent=11 // pred_region
        _
      $region44: #{_lambda_.5} parent=11 // pred_fallthru
        _
      // Predicated region
      $region45: #{_lambda_.5} parent=11 // pred_check
        %p389 = pneg %p261
      $region46: #{_lambda_.5} parent=11 // pred_check_branch
        %391 = sbr.rel (%p389) target = $region48
      $region47: #{_lambda_.5} parent=11 // pred_region
        _
      $region48: #{_lambda_.5} parent=11 // pred_fallthru
        _
      // Predicated region
      $region49: #{_lambda_.5} parent=11 // pred_check
        %p392 = pneg %p282
      $region50: #{_lambda_.5} parent=11 // pred_check_branch
        %394 = sbr.rel (%p392) target = $region52
      $region51: #{_lambda_.5} parent=11 // pred_region
        _
      $region52: #{_lambda_.5} parent=11 // pred_fallthru
        _
      // Predicated region
      $region53: #{_lambda_.5} parent=11 // pred_check
        %p395 = pneg %p303
      $region54: #{_lambda_.5} parent=11 // pred_check_branch
        %397 = sbr.rel (%p395) target = $region56
      $region55: #{_lambda_.5} parent=11 // pred_region
        _
      $region56: #{_lambda_.5} parent=11 // pred_fallthru
        _
      // Predicated region
      $region57: #{_lambda_.5} parent=11 // pred_check
        %p398 = pneg %p324
      $region58: #{_lambda_.5} parent=11 // pred_check_branch
        %400 = sbr.rel (%p398) target = $region60
      $region59: #{_lambda_.5} parent=11 // pred_region
        _
      $region60: #{_lambda_.5} parent=11 // pred_fallthru
        _
    $region12: #{_lambda_.5} parent=5 // pred_fallthru
      _
    %p401 = scmp.lt.s32.totalorder %s20, 2
    // Predicated region
    $region61: #{_lambda_.5} parent=5 // pred_check
      %p402 = pneg %p401
    $region62: #{_lambda_.5} parent=5 // pred_check_branch
      %404 = sbr.rel (%p402) target = $region64
    $region63: #{_lambda_.5} parent=5 // pred_region
      // Predicated region
      $region65: #{_lambda_.5} parent=63 // pred_check
        %p405 = pneg %p40
      $region66: #{_lambda_.5} parent=63 // pred_check_branch
        %407 = sbr.rel (%p405) target = $region68
      $region67: #{_lambda_.5} parent=63 // pred_region
        %p408 = scmp.lt.s32.totalorder %s20, 1
        %s409 = scalar_select %p408, %s20, 1
        %s410 = smul.addr %s409, 2
        %s411 = smul.addr %s410, 8
        %s412 = scalar_lea.vmem %s0, %s411
      $region68: #{_lambda_.5} parent=63 // pred_fallthru
        _
      // Predicated region
      $region69: #{_lambda_.5} parent=63 // pred_check
        %p413 = pneg %p66
      $region70: #{_lambda_.5} parent=63 // pred_check_branch
        %415 = sbr.rel (%p413) target = $region72
      $region71: #{_lambda_.5} parent=63 // pred_region
        %p416 = scmp.lt.s32.totalorder %s20, 1
        %s417 = scalar_select %p416, %s20, 1
        %s418 = scalar_lea.vmem %s1, %s417
      $region72: #{_lambda_.5} parent=63 // pred_fallthru
        _
    $region64: #{_lambda_.5} parent=5 // pred_fallthru
      _
    %p419 = scmp.le.s32.totalorder 1, %s20
    %p420 = scmp.lt.s32.totalorder %s20, 3
    %p421 = pnand %p419, %p420
    %p422 = pneg %p421
    // Predicated region
    $region73: #{_lambda_.5} parent=5 // pred_check
      _
    $region74: #{_lambda_.5} parent=5 // pred_check_branch
      %424 = sbr.rel (%p421) target = $region76
    $region75: #{_lambda_.5} parent=5 // pred_region
      %s425 = ssub.s32 %s20, 1
      %p426 = scmp.lt.s32.totalorder %s25, 1
      %s427 = scalar_select %p426, %s25, 1
      %s428 = smul.addr %s427, 2
      %s429 = smul.addr %s428, 8
      %s430 = scalar_lea.vmem %s0, %s429
      %p431 = pneg %p46
      %p432 = pneg %p43
      %p433 = scmp.lt.s32.totalorder %s25, 1
      %s434 = scalar_select %p433, %s25, 1
      %s435 = scalar_lea.vmem %s1, %s434
      %p436 = pneg %p72
      %p437 = pneg %p69
      %p438 = pneg %p93
      %p439 = pneg %p90
      %p440 = pneg %p114
      %p441 = pneg %p111
      %p442 = pneg %p135
      %p443 = pneg %p132
      %p444 = pneg %p156
      %p445 = pneg %p153
      %p446 = pneg %p177
      %p447 = pneg %p174
      %p448 = pneg %p198
      %p449 = pneg %p195
      %p450 = pneg %p219
      %p451 = pneg %p216
      %p452 = pneg %p240
      %p453 = pneg %p237
      %p454 = pneg %p261
      %p455 = pneg %p258
      %p456 = pneg %p282
      %p457 = pneg %p279
      %p458 = pneg %p303
      %p459 = pneg %p300
      %p460 = pneg %p324
      %p461 = pneg %p321
      %p462 = pneg %p350
      %p463 = pneg %p347
      %p464 = scmp.lt.s32.totalorder %s25, 1
      %s465 = scalar_select %p464, %s25, 1
      %s466 = smul.addr %s465, 2
      %s467 = smul.addr %s466, 8
      %s468 = scalar_lea.vmem %s14, %s467
      %p469 = scmp.lt.s32.totalorder %s25, 1
      %s470 = scalar_select %p469, %s25, 1
      %s471 = smul.addr %s470, 2
      %s472 = smul.addr %s471, 8
      %s473 = scalar_lea.vmem %s0, %s472
      %p474 = scmp.lt.s32.totalorder %s25, 1
      %s475 = scalar_select %p474, %s25, 1
      %s476 = scalar_lea.vmem %s1, %s475
      %p477 = scmp.lt.s32.totalorder %s25, 1
      %s478 = scalar_select %p477, %s25, 1
      %s479 = smul.addr %s478, 2
      %s480 = smul.addr %s479, 8
      %s481 = scalar_lea.vmem %s14, %s480
      %v483 = vld [vmem:[%s473] sm:$0xff]
      %v484 = vld [vmem:[%s473 + $0x8] sm:$0xff]
      %v485 = vpack.c.bf16 %v484, %v483
      %v486 = vld [vmem:[%s2] sm:$0xf]
      %v487 = vld [vmem:[%s2 + $0x4] sm:$0xf]
      %v488 = vld [vmem:[%s2 + $0x8] sm:$0xf]
      %v489 = vld [vmem:[%s2 + $0xc] sm:$0xf]
      %v490 = vld [vmem:[%s3] sm:$0x1]
      %v492 = vperm.slane %v490, 0
      %v498 = vunpack.c.l.b16 %v486
      %v499 = vunpack.c.l.b16 %v487
      %v500 = vunpack.c.l.b16 %v488
      %v501 = vunpack.c.l.b16 %v489
      %v502 = vpack.c.b16 %v499, %v498
      %v503 = vpack.c.b16 %v501, %v500
      %vm506 = vcmask 261120
      %v508 = vsel %vm506, %v485, 0
      %510 = vmatpush.bf16.msra.mxu0 0
      %511 = vmatpush.bf16.msra.mxu0 0
      %512 = vmatpush.bf16.msra.mxu0 0
      %513 = vmatpush.bf16.msra.mxu0 0
      %514 = vmatpush.bf16.msra.mxu0 0
      %515 = vmatpush.bf16.msra.mxu0 0
      %516 = vmatpush.bf16.msra.mxu0 %v503
      %517 = vmatpush.bf16.msra.mxu0 %v502
      %518 = vmatmul.bf16.gmra.mxu0 %v508
      %v519 = vpop.f32.mrf.mxu0
      %v520 = vadd.f32 %v492, %v519
      %v521 = vpop.f32.mrf.mxu0
      %v522 = vadd.f32 %v492, %v521
      %523 = vdwg.mxu0
      %v524 = vld [vmem:[%s476] sm:$0x1]
      %v525 = vpack.c.bf16 %v522, %v520
      %v526 = vlaneseq
      %v527 = vand.u32 %v526, 127
      %vm528 = vcmp.ge.s32.totalorder %v527, 0
      %vm529 = vcmp.lt.s32.totalorder %v527, 8
      %vm530 = vmand %vm528, %vm529
      %v531 = vsel %vm530, 1, 0
      %v532 = vcvt.s32.f32 %v531
      %v533 = vmul.f32 %v520, %v532
      %v534 = vmul.f32 %v522, %v532
      %v535 = vpack.c.bf16 %v534, %v533
      %537 = vrot.lane.b32.xlu0 %v525, 96
      %v538 = vpop.permute.xlu0 %537
      %v540 = vsel %vm506, %v535, 0
      %v543 = vsel %vm506, %v538, 0
      %545 = vmatpush.bf16.xpose.msra.mxu0 0
      %546 = vmatpush.bf16.xpose.msra.mxu0 0
      %547 = vmatpush.bf16.xpose.msra.mxu0 0
      %548 = vmatpush.bf16.xpose.msra.mxu0 0
      %549 = vmatpush.bf16.xpose.msra.mxu0 0
      %550 = vmatpush.bf16.xpose.msra.mxu0 0
      %551 = vmatpush.bf16.xpose.msra.mxu0 0
      %552 = vmatpush.bf16.xpose.msra.mxu0 %v543
      %553 = vmatmul.bf16.gmra.mxu0 %v540
      %v554 = vpop.f32.mrf.mxu0
      %v555 = vadd.f32 0.0, %v554
      %v556 = vpop.f32.mrf.mxu0
      %v557 = vadd.f32 0.0, %v556
      %558 = vdwg.mxu0
      %v559 = vmul.f32 %v555, 0.35355338
      %v560 = vmul.f32 %v557, 0.35355338
      %v562 = vperm.slane %v524, 0
      %v564 = vadd.f32 %v559, %v562
      %v565 = vadd.f32 %v560, %v562
      %vm566 = vcmask 130048
      %v567 = vsel %vm566, %v564, -inf
      %568 = vmax.xlane.f32.xlu0 %v567
      %v569 = vpop.xlane.xlu0 %568
      %v570 = vsel %vm566, %v565, -inf
      %571 = vmax.xlane.f32.xlu0 %v570
      %v572 = vpop.xlane.xlu0 %571
      %v573 = vsub.f32 %v564, %v569
      %v574 = vsub.f32 %v565, %v572
      %v575 = vmul.f32 %v573, 1.442695
      %v576 = vpow.pop %v575
      %v577 = vmul.f32 %v574, 1.442695
      %v578 = vpow.pop %v577
      %v579 = vsel %vm566, %v576, 0.0
      %580 = vadd.xlane.f32.xlu0 %v579
      %v581 = vpop.xlane.xlu0 %580
      %v582 = vsel %vm566, %v578, 0.0
      %583 = vadd.xlane.f32.xlu0 %v582
      %v584 = vpop.xlane.xlu0 %583
      %v585 = vrcp.pop %v581
      %v586 = vmul.f32 %v581, %v585
      %v587 = vsub.f32 1.0, %v586
      %v588 = vmul.f32 %v585, %v587
      %v589 = vadd.f32 %v585, %v588
      %vm590 = vweird.f32 %v581
      %vm591 = vweird.f32 %v585
      %vm592 = vmor %vm590, %vm591
      %v593 = vsel %vm592, %v585, %v589
      %v594 = vand.u32 2147483647, %v581
      %vm595 = vcmp.eq.f32.partialorder %v594, 8.507059e+37
      %v596 = vand.u32 %v581, 2147483648
      %v597 = vor.u32 1.1754944e-38, %v596
      %v598 = vsel %vm595, %v597, %v593
      %v599 = vmul.f32 %v576, %v598
      %v600 = vrcp.pop %v584
      %v601 = vmul.f32 %v584, %v600
      %v602 = vsub.f32 1.0, %v601
      %v603 = vmul.f32 %v600, %v602
      %v604 = vadd.f32 %v600, %v603
      %vm605 = vweird.f32 %v584
      %vm606 = vweird.f32 %v600
      %vm607 = vmor %vm605, %vm606
      %v608 = vsel %vm607, %v600, %v604
      %v609 = vand.u32 2147483647, %v584
      %vm610 = vcmp.eq.f32.partialorder %v609, 8.507059e+37
      %v611 = vand.u32 %v584, 2147483648
      %v612 = vor.u32 1.1754944e-38, %v611
      %v613 = vsel %vm610, %v612, %v608
      %v614 = vmul.f32 %v578, %v613
      %616 = vrot.lane.b32.xlu0 %v532, 64
      %v617 = vpop.permute.xlu0 %616
      %v619 = vmul.f32 %v520, %v617
      %v620 = vmul.f32 %v522, %v617
      %v621 = vpack.c.bf16 %v620, %v619
      %v622 = vpack.c.bf16 %v614, %v599
      %vm623 = vcmp.ge.s32.totalorder %v527, 8
      %vm624 = vcmp.lt.s32.totalorder %v527, 16
      %vm625 = vmand %vm623, %vm624
      %v626 = vsel %vm625, 1, 0
      %v627 = vcvt.s32.f32 %v626
      %v628 = vmul.f32 %v520, %v627
      %v629 = vmul.f32 %v522, %v627
      %v630 = vpack.c.bf16 %v629, %v628
      %v632 = vsel %vm506, %v630, 0
      %634 = vmatpush.bf16.xpose.msra.mxu0 0
      %635 = vmatpush.bf16.xpose.msra.mxu0 0
      %636 = vmatpush.bf16.xpose.msra.mxu0 0
      %637 = vmatpush.bf16.xpose.msra.mxu0 0
      %638 = vmatpush.bf16.xpose.msra.mxu0 0
      %639 = vmatpush.bf16.xpose.msra.mxu0 0
      %640 = vmatpush.bf16.xpose.msra.mxu0 0
      %641 = vmatpush.bf16.xpose.msra.mxu0 %v543
      %642 = vmatmul.bf16.gmra.mxu0 %v632
      %v643 = vpop.f32.mrf.mxu0
      %v644 = vadd.f32 0.0, %v643
      %v645 = vpop.f32.mrf.mxu0
      %v646 = vadd.f32 0.0, %v645
      %647 = vdwg.mxu0
      %v648 = vmul.f32 %v644, 0.35355338
      %v649 = vmul.f32 %v646, 0.35355338
      %v650 = vadd.f32 %v648, %v562
      %v651 = vadd.f32 %v649, %v562
      %v652 = vsel %vm566, %v650, -inf
      %653 = vmax.xlane.f32.xlu0 %v652
      %v654 = vpop.xlane.xlu0 %653
      %v655 = vsel %vm566, %v651, -inf
      %656 = vmax.xlane.f32.xlu0 %v655
      %v657 = vpop.xlane.xlu0 %656
      %v658 = vsub.f32 %v650, %v654
      %v659 = vsub.f32 %v651, %v657
      %v660 = vmul.f32 %v658, 1.442695
      %v661 = vpow.pop %v660
      %v662 = vmul.f32 %v659, 1.442695
      %v663 = vpow.pop %v662
      %v664 = vsel %vm566, %v661, 0.0
      %665 = vadd.xlane.f32.xlu0 %v664
      %v666 = vpop.xlane.xlu0 %665
      %v667 = vsel %vm566, %v663, 0.0
      %668 = vadd.xlane.f32.xlu0 %v667
      %v669 = vpop.xlane.xlu0 %668
      %v670 = vrcp.pop %v666
      %v671 = vmul.f32 %v666, %v670
      %v672 = vsub.f32 1.0, %v671
      %v673 = vmul.f32 %v670, %v672
      %v674 = vadd.f32 %v670, %v673
      %vm675 = vweird.f32 %v666
      %vm676 = vweird.f32 %v670
      %vm677 = vmor %vm675, %vm676
      %v678 = vsel %vm677, %v670, %v674
      %v679 = vand.u32 2147483647, %v666
      %vm680 = vcmp.eq.f32.partialorder %v679, 8.507059e+37
      %v681 = vand.u32 %v666, 2147483648
      %v682 = vor.u32 1.1754944e-38, %v681
      %v683 = vsel %vm680, %v682, %v678
      %v684 = vmul.f32 %v661, %v683
      %v685 = vrcp.pop %v669
      %v686 = vmul.f32 %v669, %v685
      %v687 = vsub.f32 1.0, %v686
      %v688 = vmul.f32 %v685, %v687
      %v689 = vadd.f32 %v685, %v688
      %vm690 = vweird.f32 %v669
      %vm691 = vweird.f32 %v685
      %vm692 = vmor %vm690, %vm691
      %v693 = vsel %vm692, %v685, %v689
      %v694 = vand.u32 2147483647, %v669
      %vm695 = vcmp.eq.f32.partialorder %v694, 8.507059e+37
      %v696 = vand.u32 %v669, 2147483648
      %v697 = vor.u32 1.1754944e-38, %v696
      %v698 = vsel %vm695, %v697, %v693
      %v699 = vmul.f32 %v663, %v698
      %701 = vrot.lane.b32.xlu0 %v627, 64
      %v702 = vpop.permute.xlu0 %701
      %v704 = vmul.f32 %v520, %v702
      %v705 = vmul.f32 %v522, %v702
      %v706 = vpack.c.bf16 %v705, %v704
      %v707 = vpack.c.bf16 %v699, %v684
      %709 = vrot.lane.b32.xlu0 %v706, 64
      %v710 = vpop.permute.xlu0 %709
      %v713 = vsel %vm566, %v707, 0
      %715 = vmatpush.bf16.msra.mxu0 0
      %716 = vmatpush.bf16.msra.mxu0 0
      %717 = vmatpush.bf16.msra.mxu0 0
      %718 = vmatpush.bf16.msra.mxu0 0
      %719 = vmatpush.bf16.msra.mxu0 0
      %720 = vmatpush.bf16.msra.mxu0 0
      %721 = vmatpush.bf16.msra.mxu0 0
      %722 = vmatpush.bf16.msra.mxu0 %v710
      %723 = vmatmul.bf16.gmra.mxu0 %v713
      %v724 = vpop.f32.mrf.mxu0
      %v725 = vadd.f32 0.0, %v724
      %v726 = vpop.f32.mrf.mxu0
      %v727 = vadd.f32 0.0, %v726
      %728 = vdwg.mxu0
      %730 = vrot.lane.b32.xlu0 %v621, 64
      %v731 = vpop.permute.xlu0 %730
      %v734 = vsel %vm566, %v622, 0
      %736 = vmatpush.bf16.msra.mxu0 0
      %737 = vmatpush.bf16.msra.mxu0 0
      %738 = vmatpush.bf16.msra.mxu0 0
      %739 = vmatpush.bf16.msra.mxu0 0
      %740 = vmatpush.bf16.msra.mxu0 0
      %741 = vmatpush.bf16.msra.mxu0 0
      %742 = vmatpush.bf16.msra.mxu0 0
      %743 = vmatpush.bf16.msra.mxu0 %v731
      %744 = vmatmul.bf16.gmra.mxu0 %v734
      %v745 = vpop.f32.mrf.mxu0
      %v746 = vadd.f32 %v725, %v745
      %v747 = vpop.f32.mrf.mxu0
      %v748 = vadd.f32 %v727, %v747
      %749 = vdwg.mxu0
      %vm750 = vcmp.ge.s32.totalorder %v527, 16
      %vm751 = vcmp.lt.s32.totalorder %v527, 24
      %vm752 = vmand %vm750, %vm751
      %v753 = vsel %vm752, 1, 0
      %v754 = vcvt.s32.f32 %v753
      %v755 = vmul.f32 %v520, %v754
      %v756 = vmul.f32 %v522, %v754
      %v757 = vpack.c.bf16 %v756, %v755
      %v759 = vsel %vm506, %v757, 0
      %761 = vmatpush.bf16.xpose.msra.mxu0 0
      %762 = vmatpush.bf16.xpose.msra.mxu0 0
      %763 = vmatpush.bf16.xpose.msra.mxu0 0
      %764 = vmatpush.bf16.xpose.msra.mxu0 0
      %765 = vmatpush.bf16.xpose.msra.mxu0 0
      %766 = vmatpush.bf16.xpose.msra.mxu0 0
      %767 = vmatpush.bf16.xpose.msra.mxu0 0
      %768 = vmatpush.bf16.xpose.msra.mxu0 %v543
      %769 = vmatmul.bf16.gmra.mxu0 %v759
      %v770 = vpop.f32.mrf.mxu0
      %v771 = vadd.f32 0.0, %v770
      %v772 = vpop.f32.mrf.mxu0
      %v773 = vadd.f32 0.0, %v772
      %774 = vdwg.mxu0
      %v775 = vmul.f32 %v771, 0.35355338
      %v776 = vmul.f32 %v773, 0.35355338
      %v777 = vadd.f32 %v775, %v562
      %v778 = vadd.f32 %v776, %v562
      %v779 = vsel %vm566, %v777, -inf
      %780 = vmax.xlane.f32.xlu0 %v779
      %v781 = vpop.xlane.xlu0 %780
      %v782 = vsel %vm566, %v778, -inf
      %783 = vmax.xlane.f32.xlu0 %v782
      %v784 = vpop.xlane.xlu0 %783
      %v785 = vsub.f32 %v777, %v781
      %v786 = vsub.f32 %v778, %v784
      %v787 = vmul.f32 %v785, 1.442695
      %v788 = vpow.pop %v787
      %v789 = vmul.f32 %v786, 1.442695
      %v790 = vpow.pop %v789
      %v791 = vsel %vm566, %v788, 0.0
      %792 = vadd.xlane.f32.xlu0 %v791
      %v793 = vpop.xlane.xlu0 %792
      %v794 = vsel %vm566, %v790, 0.0
      %795 = vadd.xlane.f32.xlu0 %v794
      %v796 = vpop.xlane.xlu0 %795
      %v797 = vrcp.pop %v793
      %v798 = vmul.f32 %v793, %v797
      %v799 = vsub.f32 1.0, %v798
      %v800 = vmul.f32 %v797, %v799
      %v801 = vadd.f32 %v797, %v800
      %vm802 = vweird.f32 %v793
      %vm803 = vweird.f32 %v797
      %vm804 = vmor %vm802, %vm803
      %v805 = vsel %vm804, %v797, %v801
      %v806 = vand.u32 2147483647, %v793
      %vm807 = vcmp.eq.f32.partialorder %v806, 8.507059e+37
      %v808 = vand.u32 %v793, 2147483648
      %v809 = vor.u32 1.1754944e-38, %v808
      %v810 = vsel %vm807, %v809, %v805
      %v811 = vmul.f32 %v788, %v810
      %v812 = vrcp.pop %v796
      %v813 = vmul.f32 %v796, %v812
      %v814 = vsub.f32 1.0, %v813
      %v815 = vmul.f32 %v812, %v814
      %v816 = vadd.f32 %v812, %v815
      %vm817 = vweird.f32 %v796
      %vm818 = vweird.f32 %v812
      %vm819 = vmor %vm817, %vm818
      %v820 = vsel %vm819, %v812, %v816
      %v821 = vand.u32 2147483647, %v796
      %vm822 = vcmp.eq.f32.partialorder %v821, 8.507059e+37
      %v823 = vand.u32 %v796, 2147483648
      %v824 = vor.u32 1.1754944e-38, %v823
      %v825 = vsel %vm822, %v824, %v820
      %v826 = vmul.f32 %v790, %v825
      %828 = vrot.lane.b32.xlu0 %v754, 64
      %v829 = vpop.permute.xlu0 %828
      %v831 = vmul.f32 %v520, %v829
      %v832 = vmul.f32 %v522, %v829
      %v833 = vpack.c.bf16 %v832, %v831
      %v834 = vpack.c.bf16 %v826, %v811
      %836 = vrot.lane.b32.xlu0 %v833, 64
      %v837 = vpop.permute.xlu0 %836
      %v840 = vsel %vm566, %v834, 0
      %842 = vmatpush.bf16.msra.mxu0 0
      %843 = vmatpush.bf16.msra.mxu0 0
      %844 = vmatpush.bf16.msra.mxu0 0
      %845 = vmatpush.bf16.msra.mxu0 0
      %846 = vmatpush.bf16.msra.mxu0 0
      %847 = vmatpush.bf16.msra.mxu0 0
      %848 = vmatpush.bf16.msra.mxu0 0
      %849 = vmatpush.bf16.msra.mxu0 %v837
      %850 = vmatmul.bf16.gmra.mxu0 %v840
      %v851 = vpop.f32.mrf.mxu0
      %v852 = vadd.f32 0.0, %v851
      %v853 = vpop.f32.mrf.mxu0
      %v854 = vadd.f32 0.0, %v853
      %855 = vdwg.mxu0
      %v856 = vadd.f32 %v746, %v852
      %v857 = vadd.f32 %v748, %v854
      %vm858 = vcmp.ge.s32.totalorder %v527, 24
      %vm859 = vcmp.lt.s32.totalorder %v527, 32
      %vm860 = vmand %vm858, %vm859
      %v861 = vsel %vm860, 1, 0
      %v862 = vcvt.s32.f32 %v861
      %v863 = vmul.f32 %v520, %v862
      %v864 = vmul.f32 %v522, %v862
      %v865 = vpack.c.bf16 %v864, %v863
      %v867 = vsel %vm506, %v865, 0
      %869 = vmatpush.bf16.xpose.msra.mxu0 0
      %870 = vmatpush.bf16.xpose.msra.mxu0 0
      %871 = vmatpush.bf16.xpose.msra.mxu0 0
      %872 = vmatpush.bf16.xpose.msra.mxu0 0
      %873 = vmatpush.bf16.xpose.msra.mxu0 0
      %874 = vmatpush.bf16.xpose.msra.mxu0 0
      %875 = vmatpush.bf16.xpose.msra.mxu0 0
      %876 = vmatpush.bf16.xpose.msra.mxu0 %v543
      %877 = vmatmul.bf16.gmra.mxu0 %v867
      %v878 = vpop.f32.mrf.mxu0
      %v879 = vadd.f32 0.0, %v878
      %v880 = vpop.f32.mrf.mxu0
      %v881 = vadd.f32 0.0, %v880
      %882 = vdwg.mxu0
      %v883 = vmul.f32 %v879, 0.35355338
      %v884 = vmul.f32 %v881, 0.35355338
      %v885 = vadd.f32 %v883, %v562
      %v886 = vadd.f32 %v884, %v562
      %v887 = vsel %vm566, %v885, -inf
      %888 = vmax.xlane.f32.xlu0 %v887
      %v889 = vpop.xlane.xlu0 %888
      %v890 = vsel %vm566, %v886, -inf
      %891 = vmax.xlane.f32.xlu0 %v890
      %v892 = vpop.xlane.xlu0 %891
      %v893 = vsub.f32 %v885, %v889
      %v894 = vsub.f32 %v886, %v892
      %v895 = vmul.f32 %v893, 1.442695
      %v896 = vpow.pop %v895
      %v897 = vmul.f32 %v894, 1.442695
      %v898 = vpow.pop %v897
      %v899 = vsel %vm566, %v896, 0.0
      %900 = vadd.xlane.f32.xlu0 %v899
      %v901 = vpop.xlane.xlu0 %900
      %v902 = vsel %vm566, %v898, 0.0
      %903 = vadd.xlane.f32.xlu0 %v902
      %v904 = vpop.xlane.xlu0 %903
      %v905 = vrcp.pop %v901
      %v906 = vmul.f32 %v901, %v905
      %v907 = vsub.f32 1.0, %v906
      %v908 = vmul.f32 %v905, %v907
      %v909 = vadd.f32 %v905, %v908
      %vm910 = vweird.f32 %v901
      %vm911 = vweird.f32 %v905
      %vm912 = vmor %vm910, %vm911
      %v913 = vsel %vm912, %v905, %v909
      %v914 = vand.u32 2147483647, %v901
      %vm915 = vcmp.eq.f32.partialorder %v914, 8.507059e+37
      %v916 = vand.u32 %v901, 2147483648
      %v917 = vor.u32 1.1754944e-38, %v916
      %v918 = vsel %vm915, %v917, %v913
      %v919 = vmul.f32 %v896, %v918
      %v920 = vrcp.pop %v904
      %v921 = vmul.f32 %v904, %v920
      %v922 = vsub.f32 1.0, %v921
      %v923 = vmul.f32 %v920, %v922
      %v924 = vadd.f32 %v920, %v923
      %vm925 = vweird.f32 %v904
      %vm926 = vweird.f32 %v920
      %vm927 = vmor %vm925, %vm926
      %v928 = vsel %vm927, %v920, %v924
      %v929 = vand.u32 2147483647, %v904
      %vm930 = vcmp.eq.f32.partialorder %v929, 8.507059e+37
      %v931 = vand.u32 %v904, 2147483648
      %v932 = vor.u32 1.1754944e-38, %v931
      %v933 = vsel %vm930, %v932, %v928
      %v934 = vmul.f32 %v898, %v933
      %936 = vrot.lane.b32.xlu0 %v862, 64
      %v937 = vpop.permute.xlu0 %936
      %v939 = vmul.f32 %v520, %v937
      %v940 = vmul.f32 %v522, %v937
      %v941 = vpack.c.bf16 %v940, %v939
      %v942 = vpack.c.bf16 %v934, %v919
      %944 = vrot.lane.b32.xlu0 %v941, 64
      %v945 = vpop.permute.xlu0 %944
      %v948 = vsel %vm566, %v942, 0
      %950 = vmatpush.bf16.msra.mxu0 0
      %951 = vmatpush.bf16.msra.mxu0 0
      %952 = vmatpush.bf16.msra.mxu0 0
      %953 = vmatpush.bf16.msra.mxu0 0
      %954 = vmatpush.bf16.msra.mxu0 0
      %955 = vmatpush.bf16.msra.mxu0 0
      %956 = vmatpush.bf16.msra.mxu0 0
      %957 = vmatpush.bf16.msra.mxu0 %v945
      %958 = vmatmul.bf16.gmra.mxu0 %v948
      %v959 = vpop.f32.mrf.mxu0
      %v960 = vadd.f32 0.0, %v959
      %v961 = vpop.f32.mrf.mxu0
      %v962 = vadd.f32 0.0, %v961
      %963 = vdwg.mxu0
      %v964 = vadd.f32 %v856, %v960
      %v965 = vadd.f32 %v857, %v962
      %v966 = vpack.c.bf16 %v965, %v964
      %v967 = vld [vmem:[%s4] sm:$0xf]
      %v968 = vld [vmem:[%s4 + $0x4] sm:$0xf]
      %v969 = vld [vmem:[%s4 + $0x8] sm:$0xf]
      %v970 = vld [vmem:[%s4 + $0xc] sm:$0xf]
      %v971 = vld [vmem:[%s5] sm:$0x1]
      %v973 = vperm.slane %v971, 0
      %v979 = vunpack.c.l.b16 %v967
      %v980 = vunpack.c.l.b16 %v968
      %v981 = vunpack.c.l.b16 %v969
      %v982 = vunpack.c.l.b16 %v970
      %v983 = vpack.c.b16 %v980, %v979
      %v984 = vpack.c.b16 %v982, %v981
      %v988 = vsel %vm506, %v966, 0
      %990 = vmatpush.bf16.msra.mxu0 0
      %991 = vmatpush.bf16.msra.mxu0 0
      %992 = vmatpush.bf16.msra.mxu0 0
      %993 = vmatpush.bf16.msra.mxu0 0
      %994 = vmatpush.bf16.msra.mxu0 0
      %995 = vmatpush.bf16.msra.mxu0 0
      %996 = vmatpush.bf16.msra.mxu0 %v984
      %997 = vmatpush.bf16.msra.mxu0 %v983
      %998 = vmatmul.bf16.gmra.mxu0 %v988
      %v999 = vpop.f32.mrf.mxu0
      %v1000 = vadd.f32 %v973, %v999
      %v1001 = vpop.f32.mrf.mxu0
      %v1002 = vadd.f32 %v973, %v1001
      %1003 = vdwg.mxu0
      %v1004 = vadd.f32 %v483, %v1000
      %v1005 = vadd.f32 %v484, %v1002
      %v1006 = vsel %vm506, %v1004, 0.0
      %1007 = vadd.xlane.f32.xlu0 %v1006
      %v1008 = vpop.xlane.xlu0 %1007
      %v1009 = vsel %vm506, %v1005, 0.0
      %1010 = vadd.xlane.f32.xlu0 %v1009
      %v1011 = vpop.xlane.xlu0 %1010
      %v1012 = vrcp.pop 32.0
      %v1013 = vmul.f32 32.0, %v1012
      %v1014 = vsub.f32 1.0, %v1013
      %v1015 = vmul.f32 %v1012, %v1014
      %v1016 = vadd.f32 %v1012, %v1015
      %vm1017 = vweird.f32 %v1012
      %v1018 = vsel %vm1017, %v1012, %v1016
      %v1019 = vmul.f32 %v1008, %v1018
      %v1020 = vmul.f32 %v1011, %v1018
      %v1021 = vsub.f32 %v1004, %v1019
      %v1022 = vsub.f32 %v1005, %v1020
      %v1023 = vmul.f32 %v1021, %v1021
      %v1024 = vmul.f32 %v1022, %v1022
      %v1025 = vsel %vm506, %v1023, 0.0
      %1026 = vadd.xlane.f32.xlu0 %v1025
      %v1027 = vpop.xlane.xlu0 %1026
      %v1028 = vsel %vm506, %v1024, 0.0
      %1029 = vadd.xlane.f32.xlu0 %v1028
      %v1030 = vpop.xlane.xlu0 %1029
      %v1031 = vmul.f32 %v1027, %v1018
      %v1032 = vmul.f32 %v1030, %v1018
      %v1033 = vadd.f32 %v1031, 1e-12
      %v1034 = vadd.f32 %v1032, 1e-12
      %v1035 = vrsqrt.pop %v1033
      %v1036 = vmul.f32 %v1035, %v1033
      %v1037 = vmul.f32 %v1036, %v1035
      %v1038 = vmul.f32 0.5, %v1037
      %v1039 = vsub.f32 1.5, %v1038
      %v1040 = vmul.f32 %v1035, %v1039
      %vm1041 = vweird.f32 %v1033
      %vm1042 = vweird.f32 %v1035
      %vm1043 = vmor %vm1041, %vm1042
      %v1044 = vsel %vm1043, %v1035, %v1040
      %v1045 = vrsqrt.pop %v1034
      %v1046 = vmul.f32 %v1045, %v1034
      %v1047 = vmul.f32 %v1046, %v1045
      %v1048 = vmul.f32 0.5, %v1047
      %v1049 = vsub.f32 1.5, %v1048
      %v1050 = vmul.f32 %v1045, %v1049
      %vm1051 = vweird.f32 %v1034
      %vm1052 = vweird.f32 %v1045
      %vm1053 = vmor %vm1051, %vm1052
      %v1054 = vsel %vm1053, %v1045, %v1050
      %v1055 = vmul.f32 %v1021, %v1044
      %v1056 = vmul.f32 %v1022, %v1054
      %v1057 = vld [vmem:[%s6] sm:$0x1]
      %v1059 = vperm.slane %v1057, 0
      %v1061 = vmul.f32 %v1055, %v1059
      %v1062 = vmul.f32 %v1056, %v1059
      %v1063 = vld [vmem:[%s7] sm:$0x1]
      %v1065 = vperm.slane %v1063, 0
      %v1067 = vadd.f32 %v1061, %v1065
      %v1068 = vadd.f32 %v1062, %v1065
      %v1069 = vpack.c.bf16 %v1068, %v1067
      %v1070 = vld [vmem:[%s8] sm:$0xf]
      %v1071 = vld [vmem:[%s8 + $0x4] sm:$0xf]
      %v1072 = vld [vmem:[%s8 + $0x8] sm:$0xf]
      %v1073 = vld [vmem:[%s8 + $0xc] sm:$0xf]
      %v1074 = vld [vmem:[%s9] sm:$0x1]
      %v1076 = vperm.slane %v1074, 0
      %v1082 = vunpack.c.l.b16 %v1070
      %v1083 = vunpack.c.l.b16 %v1071
      %v1084 = vunpack.c.l.b16 %v1072
      %v1085 = vunpack.c.l.b16 %v1073
      %v1086 = vpack.c.b16 %v1083, %v1082
      %v1087 = vpack.c.b16 %v1085, %v1084
      %v1091 = vsel %vm506, %v1069, 0
      %1093 = vmatpush.bf16.msra.mxu0 0
      %1094 = vmatpush.bf16.msra.mxu0 0
      %1095 = vmatpush.bf16.msra.mxu0 0
      %1096 = vmatpush.bf16.msra.mxu0 0
      %1097 = vmatpush.bf16.msra.mxu0 0
      %1098 = vmatpush.bf16.msra.mxu0 0
      %1099 = vmatpush.bf16.msra.mxu0 %v1087
      %1100 = vmatpush.bf16.msra.mxu0 %v1086
      %1101 = vmatmul.bf16.gmra.mxu0 %v1091
      %v1102 = vpop.f32.mrf.mxu0
      %v1103 = vadd.f32 %v1076, %v1102
      %v1104 = vpop.f32.mrf.mxu0
      %v1105 = vadd.f32 %v1076, %v1104
      %1106 = vdwg.mxu0
      %v1107 = vmul.f32 %v1103, %v1103
      %v1108 = vmul.f32 %v1105, %v1105
      %v1109 = vmul.f32 %v1103, %v1107
      %v1110 = vmul.f32 %v1105, %v1108
      %v1111 = vmul.f32 %v1109, 0.044715
      %v1112 = vmul.f32 %v1110, 0.044715
      %v1113 = vadd.f32 %v1103, %v1111
      %v1114 = vadd.f32 %v1105, %v1112
      %v1115 = vmul.f32 %v1113, 0.7978846
      %v1116 = vmul.f32 %v1114, 0.7978846
      %v1117 = vtanh.pop %v1115
      %v1118 = vtanh.pop %v1116
      %v1119 = vadd.f32 %v1117, 1.0
      %v1120 = vadd.f32 %v1118, 1.0
      %v1121 = vmul.f32 %v1119, 0.5
      %v1122 = vmul.f32 %v1120, 0.5
      %v1123 = vmul.f32 %v1103, %v1121
      %v1124 = vmul.f32 %v1105, %v1122
      %v1125 = vpack.c.bf16 %v1124, %v1123
      %v1126 = vld [vmem:[%s10] sm:$0xf]
      %v1127 = vld [vmem:[%s10 + $0x4] sm:$0xf]
      %v1128 = vld [vmem:[%s10 + $0x8] sm:$0xf]
      %v1129 = vld [vmem:[%s10 + $0xc] sm:$0xf]
      %v1130 = vld [vmem:[%s10 + $0x10] sm:$0xf]
      %v1131 = vld [vmem:[%s10 + $0x14] sm:$0xf]
      %v1132 = vld [vmem:[%s10 + $0x18] sm:$0xf]
      %v1133 = vld [vmem:[%s10 + $0x1c] sm:$0xf]
      %v1134 = vld [vmem:[%s11] sm:$0x1]
      %v1136 = vperm.slane %v1134, 0
      %v1146 = vunpack.c.l.b16 %v1126
      %v1147 = vunpack.c.l.b16 %v1127
      %v1148 = vunpack.c.l.b16 %v1128
      %v1149 = vunpack.c.l.b16 %v1129
      %v1150 = vunpack.c.l.b16 %v1130
      %v1151 = vunpack.c.l.b16 %v1131
      %v1152 = vunpack.c.l.b16 %v1132
      %v1153 = vunpack.c.l.b16 %v1133
      %v1154 = vpack.c.b16 %v1147, %v1146
      %v1155 = vpack.c.b16 %v1149, %v1148
      %v1156 = vpack.c.b16 %v1151, %v1150
      %v1157 = vpack.c.b16 %v1153, %v1152
      %vm1162 = vcmask 523264
      %v1164 = vsel %vm1162, %v1125, 0
      %1166 = vmatpush.bf16.msra.mxu0 0
      %1167 = vmatpush.bf16.msra.mxu0 0
      %1168 = vmatpush.bf16.msra.mxu0 0
      %1169 = vmatpush.bf16.msra.mxu0 0
      %1170 = vmatpush.bf16.msra.mxu0 %v1157
      %1171 = vmatpush.bf16.msra.mxu0 %v1156
      %1172 = vmatpush.bf16.msra.mxu0 %v1155
      %1173 = vmatpush.bf16.msra.mxu0 %v1154
      %1174 = vmatmul.bf16.gmra.mxu0 %v1164
      %v1175 = vpop.f32.mrf.mxu0
      %v1176 = vadd.f32 %v1136, %v1175
      %v1177 = vpop.f32.mrf.mxu0
      %v1178 = vadd.f32 %v1136, %v1177
      %1179 = vdwg.mxu0
      %v1180 = vadd.f32 %v1067, %v1176
      %v1181 = vadd.f32 %v1068, %v1178
      %v1182 = vsel %vm506, %v1180, 0.0
      %1183 = vadd.xlane.f32.xlu0 %v1182
      %v1184 = vpop.xlane.xlu0 %1183
      %v1185 = vsel %vm506, %v1181, 0.0
      %1186 = vadd.xlane.f32.xlu0 %v1185
      %v1187 = vpop.xlane.xlu0 %1186
      %v1188 = vmul.f32 %v1184, %v1018
      %v1189 = vmul.f32 %v1187, %v1018
      %v1190 = vsub.f32 %v1180, %v1188
      %v1191 = vsub.f32 %v1181, %v1189
      %v1192 = vmul.f32 %v1190, %v1190
      %v1193 = vmul.f32 %v1191, %v1191
      %v1194 = vsel %vm506, %v1192, 0.0
      %1195 = vadd.xlane.f32.xlu0 %v1194
      %v1196 = vpop.xlane.xlu0 %1195
      %v1197 = vsel %vm506, %v1193, 0.0
      %1198 = vadd.xlane.f32.xlu0 %v1197
      %v1199 = vpop.xlane.xlu0 %1198
      %v1200 = vmul.f32 %v1196, %v1018
      %v1201 = vmul.f32 %v1199, %v1018
      %v1202 = vadd.f32 %v1200, 1e-12
      %v1203 = vadd.f32 %v1201, 1e-12
      %v1204 = vrsqrt.pop %v1202
      %v1205 = vmul.f32 %v1204, %v1202
      %v1206 = vmul.f32 %v1205, %v1204
      %v1207 = vmul.f32 0.5, %v1206
      %v1208 = vsub.f32 1.5, %v1207
      %v1209 = vmul.f32 %v1204, %v1208
      %vm1210 = vweird.f32 %v1202
      %vm1211 = vweird.f32 %v1204
      %vm1212 = vmor %vm1210, %vm1211
      %v1213 = vsel %vm1212, %v1204, %v1209
      %v1214 = vrsqrt.pop %v1203
      %v1215 = vmul.f32 %v1214, %v1203
      %v1216 = vmul.f32 %v1215, %v1214
      %v1217 = vmul.f32 0.5, %v1216
      %v1218 = vsub.f32 1.5, %v1217
      %v1219 = vmul.f32 %v1214, %v1218
      %vm1220 = vweird.f32 %v1203
      %vm1221 = vweird.f32 %v1214
      %vm1222 = vmor %vm1220, %vm1221
      %v1223 = vsel %vm1222, %v1214, %v1219
      %v1224 = vmul.f32 %v1190, %v1213
      %v1225 = vmul.f32 %v1191, %v1223
      %v1226 = vld [vmem:[%s12] sm:$0x1]
      %v1228 = vperm.slane %v1226, 0
      %v1230 = vmul.f32 %v1224, %v1228
      %v1231 = vmul.f32 %v1225, %v1228
      %v1232 = vld [vmem:[%s13] sm:$0x1]
      %v1234 = vperm.slane %v1232, 0
      %v1236 = vadd.f32 %v1230, %v1234
      %v1237 = vadd.f32 %v1231, %v1234
      %1238 = vst.msk [vmem:[%s481] sm:$0xff] %vm506, %v1236
      %1239 = vst.msk [vmem:[%s481 + $0x8] sm:$0xff] %vm506, %v1237
      %p1240 = scmp.lt.s32.totalorder %s25, 1
      %s1241 = scalar_select %p1240, %s25, 1
      %s1242 = smul.addr %s1241, 2
      %s1243 = smul.addr %s1242, 8
      %s1244 = scalar_lea.vmem %s14, %s1243
      // Predicated region
      $region77: #{_lambda_.5} parent=75 // pred_check
        %p1245 = pneg %p347
      $region78: #{_lambda_.5} parent=75 // pred_check_branch
        %1247 = sbr.rel (%p1245) target = $region80
      $region79: #{_lambda_.5} parent=75 // pred_region
        _
      $region80: #{_lambda_.5} parent=75 // pred_fallthru
        _
    $region76: #{_lambda_.5} parent=5 // pred_fallthru
      _
    %p1248 = scmp.le.s32.totalorder 2, %s20
    // Predicated region
    $region81: #{_lambda_.5} parent=5 // pred_check
      %p1249 = pneg %p1248
    $region82: #{_lambda_.5} parent=5 // pred_check_branch
      %1251 = sbr.rel (%p1249) target = $region84
    $region83: #{_lambda_.5} parent=5 // pred_region
      %s1252 = ssub.s32 %s20, 2
      // Predicated region
      $region85: #{_lambda_.5} parent=83 // pred_check
        %p1253 = pneg %p353
      $region86: #{_lambda_.5} parent=83 // pred_check_branch
        %1255 = sbr.rel (%p1253) target = $region88
      $region87: #{_lambda_.5} parent=83 // pred_region
        %p1256 = scmp.lt.s32.totalorder %s26, 1
        %s1257 = scalar_select %p1256, %s26, 1
        %s1258 = smul.addr %s1257, 2
        %s1259 = smul.addr %s1258, 8
        %s1260 = scalar_lea.vmem %s14, %s1259
      $region88: #{_lambda_.5} parent=83 // pred_fallthru
        _
    $region84: #{_lambda_.5} parent=5 // pred_fallthru
      _
  $region6: #{_lambda_.5} parent=0 // loop_footer
    %s24 = sadd.s32 1, %s20
  $region7: #{_lambda_.5} parent=0 // loop_footer_branch
    %19 = sbr.rel target = $region3
  $region8: #{_lambda_.5} parent=0 // loop_exit
    _

</llo_original>
